<compile_context>
chip_gen: v7x
topology: tpu7x:2x2x1
jax: 0.10.0
libtpu: 0.0.40
codegen_flags: <defaults>
</compile_context>

<pallas_src>
import jax
import jax.numpy as jnp
from jax import lax
from jax.experimental import pallas as pl
from jax.experimental.pallas import tpu as pltpu


def _relu(x):
    return jnp.maximum(x, 0.0)


# ---------------------------------------------------------------------------
# Fused kernel: edge path ([NN, *]) + node path ([N, *]) in one invocation.
# ---------------------------------------------------------------------------
def cdgon_kernel(nemb_ref, eemb_ref, nflow_ref, ane_ref, r_ref, t_ref, rt_ref,
                 wsf_ref, wef_ref, bf_ref,          # folded node_to_edge @ W_ev1
                 wev2_ref, bev2_ref,                # edge_to_value tail (row form)
                 wg_ref, bg_ref,                    # gamma_e_dedunce
                 wee_ref, bee_ref,                  # edge_to_edge
                 w2s_ref, w2e_ref, b2_ref,          # node_to_edge_2 (split halves)
                 w3_ref, w4_ref,                    # W_3, W_4
                 wa_ref, ba_ref,                    # alpha_n_dedunce
                 wf1_ref, bf1_ref, wf2_ref, bf2_ref,  # f_theta
                 out_ref, eind_ref):
    eps = jnp.float32(1e-4)
    N = nemb_ref.shape[0]
    NN = eemb_ref.shape[0]

    nemb = nemb_ref[...]            # [N, D]
    eemb = eemb_ref[...]            # [NN, D]
    nflow = nflow_ref[...]          # [N, D]
    R = r_ref[...]                  # [NN, N]  (R @ x)[k] = x[k // N]  (start node)
    T = t_ref[...]                  # [NN, N]  (T @ x)[k] = x[k %  N]  (end node)
    Rt = rt_ref[...]                # [N, NN]

    def dot(a, b):
        return jnp.dot(a, b, preferred_element_type=jnp.float32)

    # --- A = relu(edge_to_value(node_to_edge(edges))) --------------------
    # Project at [N, H] and broadcast to [NN, H] with R / T (factor-N fewer flops
    # than projecting [NN, 2D]).
    s_a = dot(nemb, wsf_ref[...])                               # [N, H]
    e_a = dot(nemb, wef_ref[...])                               # [N, H]
    t1 = _relu(dot(R, s_a) + dot(T, e_a) + bf_ref[...])         # [NN, H]
    # 1-output-column Linear as VPU mul + lane reduce (avoid 1-col MXU matmul).
    ev = jnp.sum(t1 * wev2_ref[...], axis=-1, keepdims=True) + bev2_ref[...]
    a_flat = _relu(ev)                                          # [NN, 1]
    eind = jnp.where(a_flat < 1.0, 0.0, 1.0)                    # [NN, 1]
    eind_ref[...] = eind

    # --- gamma_e softmax (dim = feature axis) + Aggr_edge -----------------
    g = dot(eemb, wg_ref[...]) + bg_ref[...]
    g = g - jnp.max(g, axis=-1, keepdims=True)
    eg = jnp.exp(g)
    gamma = eg * pl.reciprocal(jnp.sum(eg, axis=-1, keepdims=True), approx=True)
    aggr = dot(ane_ref[...], eind * gamma * eemb)               # [N, D]

    # --- node path ---------------------------------------------------------
    # A2d[i, j] = a_flat[i*N + j], built lane-dense in-kernel (no relayout).
    a2d = dot(Rt, a_flat * T)                                   # [N, N]
    rowsum = jnp.sum(a2d, axis=-1, keepdims=True)               # [N, 1]
    dvec = lax.rsqrt(jnp.maximum(rowsum, eps))                  # [N, 1] (EUP)
    msg = dvec * dot(a2d, dvec * nemb)                          # (D A D) X
    massage_conv = dot(msg, w3_ref[...])                        # [N, D]

    alpha_n = dot(massage_conv, wa_ref[...]) + ba_ref[...]
    amax = jnp.maximum(jnp.max(jnp.abs(alpha_n)), eps)          # global max (scalar)
    alpha_n = alpha_n / amax

    def f_theta(x):
        tt = _relu(dot(x, wf1_ref[...]) + bf1_ref[...])
        return jnp.sum(tt * wf2_ref[...], axis=-1, keepdims=True) + bf2_ref[...]

    denom = f_theta(nflow)                                      # [N, 1]
    denom = jnp.where(denom == 0.0, eps, denom)                 # torch semantics
    norm_value = f_theta(nemb) * pl.reciprocal(denom, approx=True)

    node_self = norm_value * dot(_relu(nflow - nemb), w4_ref[...])
    node_self = alpha_n * node_self
    pred_node = node_self + aggr                                # [N, D]

    # --- pred_edge ----------------------------------------------------------
    edge_self = dot(eemb, wee_ref[...]) + bee_ref[...]          # [NN, D]
    s2 = dot(nemb, w2s_ref[...])                                # [N, D]
    e2 = dot(nemb, w2e_ref[...])                                # [N, D]
    edge_info = dot(R, s2) + dot(T, e2) + b2_ref[...]           # [NN, D]
    pred_edge = eind * (edge_self + edge_info)                  # [NN, D]

    # Single lane-dense output slab [N + NN, D] (no host-side concat).
    out_ref[pl.ds(0, N), :] = pred_node
    out_ref[pl.ds(N, NN), :] = pred_edge


# ---------------------------------------------------------------------------
# Parameters (Linear weights stored pre-transposed as (in, out); concat-input
# Linears split into start/end halves).
# ---------------------------------------------------------------------------
def init_params(key, D):
    H = D // 2

    def nrm(k, shape, std=0.1):
        return std * jax.random.normal(k, shape, dtype=jnp.float32)

    ks = jax.random.split(key, 22)
    return {
        "Wn2e_s": nrm(ks[0], (D, D)), "Wn2e_e": nrm(ks[1], (D, D)), "b_n2e": nrm(ks[2], (1, D)),
        "W_ev1": nrm(ks[3], (D, H)), "b_ev1": nrm(ks[4], (1, H)),
        "W_ev2": nrm(ks[5], (H, 1)), "b_ev2": nrm(ks[6], (1, 1)),
        "W_f1": nrm(ks[7], (D, H)), "b_f1": nrm(ks[8], (1, H)),
        "W_f2": nrm(ks[9], (H, 1)), "b_f2": nrm(ks[10], (1, 1)),
        "W_a": nrm(ks[11], (D, D)), "b_a": nrm(ks[12], (1, D)),
        "W_g": nrm(ks[13], (D, D)), "b_g": nrm(ks[14], (1, D)),
        "W_ee": nrm(ks[15], (D, D)), "b_ee": nrm(ks[16], (1, D)),
        "Wn2e2_s": nrm(ks[17], (D, D)), "Wn2e2_e": nrm(ks[18], (D, D)), "b_n2e2": nrm(ks[19], (1, D)),
        "W_3": nrm(ks[20], (D, D)), "W_4": nrm(ks[21], (D, D)),
    }


def cdgon_ode_forward(params, node_flow_norm, A_ne, N, t, node_edge_embedding):
    """node_edge_embedding: [N + N*N, D] -> (pred_node_edge, edge_indicator)."""
    del t  # unused by the reference forward
    D = params["W_3"].shape[0]
    NN = N * N
    f32 = jnp.float32

    node_emb = node_edge_embedding[:N]      # [N, D]
    edge_emb = node_edge_embedding[N:]      # [NN, D]

    # Constant 0/1 broadcast matrices for fully-connected (start, end) pairs,
    # flat index k = i*N + j (matches torch's row-major reshape / torch.where).
    eye = jnp.eye(N, dtype=f32)
    R = jnp.repeat(eye, N, axis=0)          # [NN, N]: start index k // N
    T = jnp.tile(eye, (N, 1))               # [NN, N]: end index   k %  N
    Rt = R.T                                # [N, NN]

    # Fold node_to_edge into edge_to_value's first Linear (parameter-only math,
    # constant-folded under jit).
    Ws_fold = params["Wn2e_s"] @ params["W_ev1"]                      # [D, H]
    We_fold = params["Wn2e_e"] @ params["W_ev1"]                      # [D, H]
    b_fold = params["b_n2e"] @ params["W_ev1"] + params["b_ev1"]      # [1, H]

    vmem = pl.BlockSpec(memory_space=pltpu.MemorySpace.VMEM)
    n_in = 27

    pred_node_edge, edge_indicator = pl.pallas_call(
        cdgon_kernel,
        out_shape=(jax.ShapeDtypeStruct((N + NN, D), f32),
                   jax.ShapeDtypeStruct((NN, 1), f32)),
        in_specs=[vmem] * n_in,
        out_specs=(vmem, vmem),
    )(node_emb, edge_emb, node_flow_norm, A_ne, R, T, Rt,
      Ws_fold, We_fold, b_fold,
      params["W_ev2"].T, params["b_ev2"],
      params["W_g"], params["b_g"],
      params["W_ee"], params["b_ee"],
      params["Wn2e2_s"], params["Wn2e2_e"], params["b_n2e2"],
      params["W_3"], params["W_4"],
      params["W_a"], params["b_a"],
      params["W_f1"], params["b_f1"], params["W_f2"].T, params["b_f2"])

    return pred_node_edge, edge_indicator


if __name__ == "__main__":
    N, D = 8, 32            # node_num, Embedding_dimension
    NN = N * N

    key = jax.random.PRNGKey(0)
    k_param, k_x, k_flow, k_ane = jax.random.split(key, 4)

    params = init_params(k_param, D)
    node_edge_embedding = jax.random.normal(k_x, (N + NN, D), dtype=jnp.float32)
    node_flow_norm = jax.random.normal(k_flow, (N, D), dtype=jnp.float32)
    # set_region_related_value: node->edge incidence-like matrix [N, N*N]
    A_ne = (jax.random.uniform(k_ane, (N, NN)) > 0.5).astype(jnp.float32)

    fwd = jax.jit(cdgon_ode_forward, static_argnums=(3,))
    pred_node_edge, edge_indicator = fwd(
        params, node_flow_norm, A_ne, N, 0.0, node_edge_embedding)

    jax.block_until_ready(pred_node_edge)
    jax.block_until_ready(edge_indicator)
    assert pred_node_edge.shape == (N + NN, D)
    assert edge_indicator.shape == (NN, 1)
    print("KERNEL_OK")
</pallas_src>

<mosaic_0001>
module attributes {stable_mosaic.version = 11 : i64} {
  func.func @cdgon_kernel(%arg0: memref<8x32xf32, #tpu.memory_space<vmem>>, %arg1: memref<64x32xf32, #tpu.memory_space<vmem>>, %arg2: memref<8x32xf32, #tpu.memory_space<vmem>>, %arg3: memref<8x64xf32, #tpu.memory_space<vmem>>, %arg4: memref<64x8xf32, #tpu.memory_space<vmem>>, %arg5: memref<64x8xf32, #tpu.memory_space<vmem>>, %arg6: memref<8x64xf32, #tpu.memory_space<vmem>>, %arg7: memref<32x16xf32, #tpu.memory_space<vmem>>, %arg8: memref<32x16xf32, #tpu.memory_space<vmem>>, %arg9: memref<1x16xf32, #tpu.memory_space<vmem>>, %arg10: memref<1x16xf32, #tpu.memory_space<vmem>>, %arg11: memref<1x1xf32, #tpu.memory_space<vmem>>, %arg12: memref<32x32xf32, #tpu.memory_space<vmem>>, %arg13: memref<1x32xf32, #tpu.memory_space<vmem>>, %arg14: memref<32x32xf32, #tpu.memory_space<vmem>>, %arg15: memref<1x32xf32, #tpu.memory_space<vmem>>, %arg16: memref<32x32xf32, #tpu.memory_space<vmem>>, %arg17: memref<32x32xf32, #tpu.memory_space<vmem>>, %arg18: memref<1x32xf32, #tpu.memory_space<vmem>>, %arg19: memref<32x32xf32, #tpu.memory_space<vmem>>, %arg20: memref<32x32xf32, #tpu.memory_space<vmem>>, %arg21: memref<32x32xf32, #tpu.memory_space<vmem>>, %arg22: memref<1x32xf32, #tpu.memory_space<vmem>>, %arg23: memref<32x16xf32, #tpu.memory_space<vmem>>, %arg24: memref<1x16xf32, #tpu.memory_space<vmem>>, %arg25: memref<1x16xf32, #tpu.memory_space<vmem>>, %arg26: memref<1x1xf32, #tpu.memory_space<vmem>>, %arg27: memref<72x32xf32, #tpu.memory_space<vmem>>, %arg28: memref<64x1xf32, #tpu.memory_space<vmem>>) attributes {dimension_semantics = [], scalar_prefetch = 0 : i64, scratch_operands = 0 : i64, tpu.core_type = #tpu.core_type<tc>} {
    %c0 = arith.constant 0 : index
    %c0_0 = arith.constant 0 : index
    %0 = vector.load %arg0[%c0, %c0_0] : memref<8x32xf32, #tpu.memory_space<vmem>>, vector<8x32xf32>
    %c0_1 = arith.constant 0 : index
    %c0_2 = arith.constant 0 : index
    %1 = vector.load %arg1[%c0_1, %c0_2] : memref<64x32xf32, #tpu.memory_space<vmem>>, vector<64x32xf32>
    %c0_3 = arith.constant 0 : index
    %c0_4 = arith.constant 0 : index
    %2 = vector.load %arg2[%c0_3, %c0_4] : memref<8x32xf32, #tpu.memory_space<vmem>>, vector<8x32xf32>
    %c0_5 = arith.constant 0 : index
    %c0_6 = arith.constant 0 : index
    %3 = vector.load %arg4[%c0_5, %c0_6] : memref<64x8xf32, #tpu.memory_space<vmem>>, vector<64x8xf32>
    %c0_7 = arith.constant 0 : index
    %c0_8 = arith.constant 0 : index
    %4 = vector.load %arg5[%c0_7, %c0_8] : memref<64x8xf32, #tpu.memory_space<vmem>>, vector<64x8xf32>
    %c0_9 = arith.constant 0 : index
    %c0_10 = arith.constant 0 : index
    %5 = vector.load %arg6[%c0_9, %c0_10] : memref<8x64xf32, #tpu.memory_space<vmem>>, vector<8x64xf32>
    %c0_11 = arith.constant 0 : index
    %c0_12 = arith.constant 0 : index
    %6 = vector.load %arg7[%c0_11, %c0_12] : memref<32x16xf32, #tpu.memory_space<vmem>>, vector<32x16xf32>
    %cst = arith.constant dense<0.000000e+00> : vector<8x16xf32>
    %7 = tpu.matmul %0, %6, %cst {dimension_numbers = #tpu.dot_dimension_numbers<[1], [0], [0], [1], [0, 0, 1, 1], [], []>} : vector<8x32xf32>, vector<32x16xf32>, vector<8x16xf32> -> vector<8x16xf32>
    %c0_13 = arith.constant 0 : index
    %c0_14 = arith.constant 0 : index
    %8 = vector.load %arg8[%c0_13, %c0_14] : memref<32x16xf32, #tpu.memory_space<vmem>>, vector<32x16xf32>
    %cst_15 = arith.constant dense<0.000000e+00> : vector<8x16xf32>
    %9 = tpu.matmul %0, %8, %cst_15 {dimension_numbers = #tpu.dot_dimension_numbers<[1], [0], [0], [1], [0, 0, 1, 1], [], []>} : vector<8x32xf32>, vector<32x16xf32>, vector<8x16xf32> -> vector<8x16xf32>
    %cst_16 = arith.constant dense<0.000000e+00> : vector<64x16xf32>
    %10 = tpu.matmul %3, %7, %cst_16 {dimension_numbers = #tpu.dot_dimension_numbers<[1], [0], [0], [1], [0, 0, 1, 1], [], []>} : vector<64x8xf32>, vector<8x16xf32>, vector<64x16xf32> -> vector<64x16xf32>
    %cst_17 = arith.constant dense<0.000000e+00> : vector<64x16xf32>
    %11 = tpu.matmul %4, %9, %cst_17 {dimension_numbers = #tpu.dot_dimension_numbers<[1], [0], [0], [1], [0, 0, 1, 1], [], []>} : vector<64x8xf32>, vector<8x16xf32>, vector<64x16xf32> -> vector<64x16xf32>
    %12 = arith.addf %10, %11 : vector<64x16xf32>
    %c0_18 = arith.constant 0 : index
    %c0_19 = arith.constant 0 : index
    %13 = vector.load %arg9[%c0_18, %c0_19] : memref<1x16xf32, #tpu.memory_space<vmem>>, vector<1x16xf32>
    %14 = vector.broadcast %13 : vector<1x16xf32> to vector<64x16xf32>
    %15 = arith.addf %12, %14 : vector<64x16xf32>
    %cst_20 = arith.constant 0.000000e+00 : f32
    %16 = vector.broadcast %cst_20 : f32 to vector<64x16xf32>
    %17 = arith.maximumf %15, %16 : vector<64x16xf32>
    %c0_21 = arith.constant 0 : index
    %c0_22 = arith.constant 0 : index
    %18 = vector.load %arg10[%c0_21, %c0_22] : memref<1x16xf32, #tpu.memory_space<vmem>>, vector<1x16xf32>
    %19 = vector.broadcast %18 : vector<1x16xf32> to vector<64x16xf32>
    %20 = arith.mulf %17, %19 : vector<64x16xf32>
    %cst_23 = arith.constant dense<0.000000e+00> : vector<64xf32>
    %21 = vector.multi_reduction <add>, %20, %cst_23 [1] : vector<64x16xf32> to vector<64xf32>
    %22 = vector.shape_cast %21 : vector<64xf32> to vector<64x1xf32>
    %c0_24 = arith.constant 0 : index
    %c0_25 = arith.constant 0 : index
    %23 = vector.load %arg11[%c0_24, %c0_25] : memref<1x1xf32, #tpu.memory_space<vmem>>, vector<1x1xf32>
    %24 = vector.broadcast %23 : vector<1x1xf32> to vector<64x1xf32>
    %25 = arith.addf %22, %24 : vector<64x1xf32>
    %cst_26 = arith.constant 0.000000e+00 : f32
    %26 = vector.broadcast %cst_26 : f32 to vector<64x1xf32>
    %27 = arith.maximumf %25, %26 : vector<64x1xf32>
    %cst_27 = arith.constant 1.000000e+00 : f32
    %28 = vector.broadcast %cst_27 : f32 to vector<64x1xf32>
    %29 = arith.cmpf olt, %27, %28 : vector<64x1xf32>
    %cst_28 = arith.constant 0.000000e+00 : f32
    %cst_29 = arith.constant 1.000000e+00 : f32
    %30 = vector.broadcast %cst_28 : f32 to vector<64x1xf32>
    %31 = vector.broadcast %cst_29 : f32 to vector<64x1xf32>
    %32 = arith.select %29, %30, %31 : vector<64x1xi1>, vector<64x1xf32>
    %c0_30 = arith.constant 0 : index
    %c0_31 = arith.constant 0 : index
    %33 = vector.load %arg28[%c0_30, %c0_31] : memref<64x1xf32, #tpu.memory_space<vmem>>, vector<64x1xf32>
    tpu.vector_store %arg28[%c0_30, %c0_31], %32 {strides = array<i32>} : memref<64x1xf32, #tpu.memory_space<vmem>>, vector<64x1xf32>,
    %c0_32 = arith.constant 0 : index
    %c0_33 = arith.constant 0 : index
    %34 = vector.load %arg12[%c0_32, %c0_33] : memref<32x32xf32, #tpu.memory_space<vmem>>, vector<32x32xf32>
    %cst_34 = arith.constant dense<0.000000e+00> : vector<64x32xf32>
    %35 = tpu.matmul %1, %34, %cst_34 {dimension_numbers = #tpu.dot_dimension_numbers<[1], [0], [0], [1], [0, 0, 1, 1], [], []>} : vector<64x32xf32>, vector<32x32xf32>, vector<64x32xf32> -> vector<64x32xf32>
    %c0_35 = arith.constant 0 : index
    %c0_36 = arith.constant 0 : index
    %36 = vector.load %arg13[%c0_35, %c0_36] : memref<1x32xf32, #tpu.memory_space<vmem>>, vector<1x32xf32>
    %37 = vector.broadcast %36 : vector<1x32xf32> to vector<64x32xf32>
    %38 = arith.addf %35, %37 : vector<64x32xf32>
    %cst_37 = arith.constant dense<0xFF800000> : vector<64xf32>
    %39 = vector.multi_reduction <maximumf>, %38, %cst_37 [1] : vector<64x32xf32> to vector<64xf32>
    %40 = vector.shape_cast %39 : vector<64xf32> to vector<64x1xf32>
    %41 = vector.broadcast %40 : vector<64x1xf32> to vector<64x32xf32>
    %42 = arith.subf %38, %41 : vector<64x32xf32>
    %43 = math.exp %42 : vector<64x32xf32>
    %cst_38 = arith.constant dense<0.000000e+00> : vector<64xf32>
    %44 = vector.multi_reduction <add>, %43, %cst_38 [1] : vector<64x32xf32> to vector<64xf32>
    %45 = vector.shape_cast %44 : vector<64xf32> to vector<64x1xf32>
    %46 = tpu.reciprocal %45 {approx = true} : vector<64x1xf32> -> vector<64x1xf32>
    %47 = vector.broadcast %46 : vector<64x1xf32> to vector<64x32xf32>
    %48 = arith.mulf %43, %47 : vector<64x32xf32>
    %c0_39 = arith.constant 0 : index
    %c0_40 = arith.constant 0 : index
    %49 = vector.load %arg3[%c0_39, %c0_40] : memref<8x64xf32, #tpu.memory_space<vmem>>, vector<8x64xf32>
    %50 = vector.broadcast %32 : vector<64x1xf32> to vector<64x32xf32>
    %51 = arith.mulf %50, %48 : vector<64x32xf32>
    %52 = arith.mulf %51, %1 : vector<64x32xf32>
    %cst_41 = arith.constant dense<0.000000e+00> : vector<8x32xf32>
    %53 = tpu.matmul %49, %52, %cst_41 {dimension_numbers = #tpu.dot_dimension_numbers<[1], [0], [0], [1], [0, 0, 1, 1], [], []>} : vector<8x64xf32>, vector<64x32xf32>, vector<8x32xf32> -> vector<8x32xf32>
    %54 = vector.broadcast %27 : vector<64x1xf32> to vector<64x8xf32>
    %55 = arith.mulf %54, %4 : vector<64x8xf32>
    %cst_42 = arith.constant dense<0.000000e+00> : vector<8x8xf32>
    %56 = tpu.matmul %5, %55, %cst_42 {dimension_numbers = #tpu.dot_dimension_numbers<[1], [0], [0], [1], [0, 0, 1, 1], [], []>} : vector<8x64xf32>, vector<64x8xf32>, vector<8x8xf32> -> vector<8x8xf32>
    %cst_43 = arith.constant dense<0.000000e+00> : vector<8xf32>
    %57 = vector.multi_reduction <add>, %56, %cst_43 [1] : vector<8x8xf32> to vector<8xf32>
    %58 = vector.shape_cast %57 : vector<8xf32> to vector<8x1xf32>
    %cst_44 = arith.constant 9.99999974E-5 : f32
    %59 = vector.broadcast %cst_44 : f32 to vector<8x1xf32>
    %60 = arith.maximumf %58, %59 : vector<8x1xf32>
    %61 = math.rsqrt %60 : vector<8x1xf32>
    %62 = vector.broadcast %61 : vector<8x1xf32> to vector<8x32xf32>
    %63 = arith.mulf %62, %0 : vector<8x32xf32>
    %cst_45 = arith.constant dense<0.000000e+00> : vector<8x32xf32>
    %64 = tpu.matmul %56, %63, %cst_45 {dimension_numbers = #tpu.dot_dimension_numbers<[1], [0], [0], [1], [0, 0, 1, 1], [], []>} : vector<8x8xf32>, vector<8x32xf32>, vector<8x32xf32> -> vector<8x32xf32>
    %65 = vector.broadcast %61 : vector<8x1xf32> to vector<8x32xf32>
    %66 = arith.mulf %65, %64 : vector<8x32xf32>
    %c0_46 = arith.constant 0 : index
    %c0_47 = arith.constant 0 : index
    %67 = vector.load %arg19[%c0_46, %c0_47] : memref<32x32xf32, #tpu.memory_space<vmem>>, vector<32x32xf32>
    %cst_48 = arith.constant dense<0.000000e+00> : vector<8x32xf32>
    %68 = tpu.matmul %66, %67, %cst_48 {dimension_numbers = #tpu.dot_dimension_numbers<[1], [0], [0], [1], [0, 0, 1, 1], [], []>} : vector<8x32xf32>, vector<32x32xf32>, vector<8x32xf32> -> vector<8x32xf32>
    %c0_49 = arith.constant 0 : index
    %c0_50 = arith.constant 0 : index
    %69 = vector.load %arg21[%c0_49, %c0_50] : memref<32x32xf32, #tpu.memory_space<vmem>>, vector<32x32xf32>
    %cst_51 = arith.constant dense<0.000000e+00> : vector<8x32xf32>
    %70 = tpu.matmul %68, %69, %cst_51 {dimension_numbers = #tpu.dot_dimension_numbers<[1], [0], [0], [1], [0, 0, 1, 1], [], []>} : vector<8x32xf32>, vector<32x32xf32>, vector<8x32xf32> -> vector<8x32xf32>
    %c0_52 = arith.constant 0 : index
    %c0_53 = arith.constant 0 : index
    %71 = vector.load %arg22[%c0_52, %c0_53] : memref<1x32xf32, #tpu.memory_space<vmem>>, vector<1x32xf32>
    %72 = vector.broadcast %71 : vector<1x32xf32> to vector<8x32xf32>
    %73 = arith.addf %70, %72 : vector<8x32xf32>
    %74 = math.absf %73 : vector<8x32xf32>
    %75 = vector.shape_cast %74 : vector<8x32xf32> to vector<1x8x32xf32>
    %cst_54 = arith.constant dense<0xFF800000> : vector<1xf32>
    %76 = vector.multi_reduction <maximumf>, %75, %cst_54 [1, 2] : vector<1x8x32xf32> to vector<1xf32>
    %77 = vector.shape_cast %76 : vector<1xf32> to vector<1x1x1xf32>
    %78 = vector.extract %77[0, 0, 0] : f32 from vector<1x1x1xf32>
    %cst_55 = arith.constant 9.99999974E-5 : f32
    %79 = arith.maximumf %78, %cst_55 : f32
    %80 = vector.broadcast %79 : f32 to vector<8x32xf32>
    %81 = arith.divf %73, %80 : vector<8x32xf32>
    %c0_56 = arith.constant 0 : index
    %c0_57 = arith.constant 0 : index
    %82 = vector.load %arg23[%c0_56, %c0_57] : memref<32x16xf32, #tpu.memory_space<vmem>>, vector<32x16xf32>
    %cst_58 = arith.constant dense<0.000000e+00> : vector<8x16xf32>
    %83 = tpu.matmul %2, %82, %cst_58 {dimension_numbers = #tpu.dot_dimension_numbers<[1], [0], [0], [1], [0, 0, 1, 1], [], []>} : vector<8x32xf32>, vector<32x16xf32>, vector<8x16xf32> -> vector<8x16xf32>
    %c0_59 = arith.constant 0 : index
    %c0_60 = arith.constant 0 : index
    %84 = vector.load %arg24[%c0_59, %c0_60] : memref<1x16xf32, #tpu.memory_space<vmem>>, vector<1x16xf32>
    %85 = vector.broadcast %84 : vector<1x16xf32> to vector<8x16xf32>
    %86 = arith.addf %83, %85 : vector<8x16xf32>
    %cst_61 = arith.constant 0.000000e+00 : f32
    %87 = vector.broadcast %cst_61 : f32 to vector<8x16xf32>
    %88 = arith.maximumf %86, %87 : vector<8x16xf32>
    %c0_62 = arith.constant 0 : index
    %c0_63 = arith.constant 0 : index
    %89 = vector.load %arg25[%c0_62, %c0_63] : memref<1x16xf32, #tpu.memory_space<vmem>>, vector<1x16xf32>
    %90 = vector.broadcast %89 : vector<1x16xf32> to vector<8x16xf32>
    %91 = arith.mulf %88, %90 : vector<8x16xf32>
    %cst_64 = arith.constant dense<0.000000e+00> : vector<8xf32>
    %92 = vector.multi_reduction <add>, %91, %cst_64 [1] : vector<8x16xf32> to vector<8xf32>
    %93 = vector.shape_cast %92 : vector<8xf32> to vector<8x1xf32>
    %c0_65 = arith.constant 0 : index
    %c0_66 = arith.constant 0 : index
    %94 = vector.load %arg26[%c0_65, %c0_66] : memref<1x1xf32, #tpu.memory_space<vmem>>, vector<1x1xf32>
    %95 = vector.broadcast %94 : vector<1x1xf32> to vector<8x1xf32>
    %96 = arith.addf %93, %95 : vector<8x1xf32>
    %cst_67 = arith.constant 0.000000e+00 : f32
    %97 = vector.broadcast %cst_67 : f32 to vector<8x1xf32>
    %98 = arith.cmpf oeq, %96, %97 : vector<8x1xf32>
    %cst_68 = arith.constant 9.99999974E-5 : f32
    %99 = vector.broadcast %cst_68 : f32 to vector<8x1xf32>
    %100 = arith.select %98, %99, %96 : vector<8x1xi1>, vector<8x1xf32>
    %c0_69 = arith.constant 0 : index
    %c0_70 = arith.constant 0 : index
    %101 = vector.load %arg23[%c0_69, %c0_70] : memref<32x16xf32, #tpu.memory_space<vmem>>, vector<32x16xf32>
    %cst_71 = arith.constant dense<0.000000e+00> : vector<8x16xf32>
    %102 = tpu.matmul %0, %101, %cst_71 {dimension_numbers = #tpu.dot_dimension_numbers<[1], [0], [0], [1], [0, 0, 1, 1], [], []>} : vector<8x32xf32>, vector<32x16xf32>, vector<8x16xf32> -> vector<8x16xf32>
    %c0_72 = arith.constant 0 : index
    %c0_73 = arith.constant 0 : index
    %103 = vector.load %arg24[%c0_72, %c0_73] : memref<1x16xf32, #tpu.memory_space<vmem>>, vector<1x16xf32>
    %104 = vector.broadcast %103 : vector<1x16xf32> to vector<8x16xf32>
    %105 = arith.addf %102, %104 : vector<8x16xf32>
    %cst_74 = arith.constant 0.000000e+00 : f32
    %106 = vector.broadcast %cst_74 : f32 to vector<8x16xf32>
    %107 = arith.maximumf %105, %106 : vector<8x16xf32>
    %c0_75 = arith.constant 0 : index
    %c0_76 = arith.constant 0 : index
    %108 = vector.load %arg25[%c0_75, %c0_76] : memref<1x16xf32, #tpu.memory_space<vmem>>, vector<1x16xf32>
    %109 = vector.broadcast %108 : vector<1x16xf32> to vector<8x16xf32>
    %110 = arith.mulf %107, %109 : vector<8x16xf32>
    %cst_77 = arith.constant dense<0.000000e+00> : vector<8xf32>
    %111 = vector.multi_reduction <add>, %110, %cst_77 [1] : vector<8x16xf32> to vector<8xf32>
    %112 = vector.shape_cast %111 : vector<8xf32> to vector<8x1xf32>
    %c0_78 = arith.constant 0 : index
    %c0_79 = arith.constant 0 : index
    %113 = vector.load %arg26[%c0_78, %c0_79] : memref<1x1xf32, #tpu.memory_space<vmem>>, vector<1x1xf32>
    %114 = vector.broadcast %113 : vector<1x1xf32> to vector<8x1xf32>
    %115 = arith.addf %112, %114 : vector<8x1xf32>
    %116 = tpu.reciprocal %100 {approx = true} : vector<8x1xf32> -> vector<8x1xf32>
    %117 = arith.mulf %115, %116 : vector<8x1xf32>
    %118 = arith.subf %2, %0 : vector<8x32xf32>
    %cst_80 = arith.constant 0.000000e+00 : f32
    %119 = vector.broadcast %cst_80 : f32 to vector<8x32xf32>
    %120 = arith.maximumf %118, %119 : vector<8x32xf32>
    %c0_81 = arith.constant 0 : index
    %c0_82 = arith.constant 0 : index
    %121 = vector.load %arg20[%c0_81, %c0_82] : memref<32x32xf32, #tpu.memory_space<vmem>>, vector<32x32xf32>
    %cst_83 = arith.constant dense<0.000000e+00> : vector<8x32xf32>
    %122 = tpu.matmul %120, %121, %cst_83 {dimension_numbers = #tpu.dot_dimension_numbers<[1], [0], [0], [1], [0, 0, 1, 1], [], []>} : vector<8x32xf32>, vector<32x32xf32>, vector<8x32xf32> -> vector<8x32xf32>
    %123 = vector.broadcast %117 : vector<8x1xf32> to vector<8x32xf32>
    %124 = arith.mulf %123, %122 : vector<8x32xf32>
    %125 = arith.mulf %81, %124 : vector<8x32xf32>
    %126 = arith.addf %125, %53 : vector<8x32xf32>
    %c0_84 = arith.constant 0 : index
    %c0_85 = arith.constant 0 : index
    %127 = vector.load %arg14[%c0_84, %c0_85] : memref<32x32xf32, #tpu.memory_space<vmem>>, vector<32x32xf32>
    %cst_86 = arith.constant dense<0.000000e+00> : vector<64x32xf32>
    %128 = tpu.matmul %1, %127, %cst_86 {dimension_numbers = #tpu.dot_dimension_numbers<[1], [0], [0], [1], [0, 0, 1, 1], [], []>} : vector<64x32xf32>, vector<32x32xf32>, vector<64x32xf32> -> vector<64x32xf32>
    %c0_87 = arith.constant 0 : index
    %c0_88 = arith.constant 0 : index
    %129 = vector.load %arg15[%c0_87, %c0_88] : memref<1x32xf32, #tpu.memory_space<vmem>>, vector<1x32xf32>
    %130 = vector.broadcast %129 : vector<1x32xf32> to vector<64x32xf32>
    %131 = arith.addf %128, %130 : vector<64x32xf32>
    %c0_89 = arith.constant 0 : index
    %c0_90 = arith.constant 0 : index
    %132 = vector.load %arg16[%c0_89, %c0_90] : memref<32x32xf32, #tpu.memory_space<vmem>>, vector<32x32xf32>
    %cst_91 = arith.constant dense<0.000000e+00> : vector<8x32xf32>
    %133 = tpu.matmul %0, %132, %cst_91 {dimension_numbers = #tpu.dot_dimension_numbers<[1], [0], [0], [1], [0, 0, 1, 1], [], []>} : vector<8x32xf32>, vector<32x32xf32>, vector<8x32xf32> -> vector<8x32xf32>
    %c0_92 = arith.constant 0 : index
    %c0_93 = arith.constant 0 : index
    %134 = vector.load %arg17[%c0_92, %c0_93] : memref<32x32xf32, #tpu.memory_space<vmem>>, vector<32x32xf32>
    %cst_94 = arith.constant dense<0.000000e+00> : vector<8x32xf32>
    %135 = tpu.matmul %0, %134, %cst_94 {dimension_numbers = #tpu.dot_dimension_numbers<[1], [0], [0], [1], [0, 0, 1, 1], [], []>} : vector<8x32xf32>, vector<32x32xf32>, vector<8x32xf32> -> vector<8x32xf32>
    %cst_95 = arith.constant dense<0.000000e+00> : vector<64x32xf32>
    %136 = tpu.matmul %3, %133, %cst_95 {dimension_numbers = #tpu.dot_dimension_numbers<[1], [0], [0], [1], [0, 0, 1, 1], [], []>} : vector<64x8xf32>, vector<8x32xf32>, vector<64x32xf32> -> vector<64x32xf32>
    %cst_96 = arith.constant dense<0.000000e+00> : vector<64x32xf32>
    %137 = tpu.matmul %4, %135, %cst_96 {dimension_numbers = #tpu.dot_dimension_numbers<[1], [0], [0], [1], [0, 0, 1, 1], [], []>} : vector<64x8xf32>, vector<8x32xf32>, vector<64x32xf32> -> vector<64x32xf32>
    %138 = arith.addf %136, %137 : vector<64x32xf32>
    %c0_97 = arith.constant 0 : index
    %c0_98 = arith.constant 0 : index
    %139 = vector.load %arg18[%c0_97, %c0_98] : memref<1x32xf32, #tpu.memory_space<vmem>>, vector<1x32xf32>
    %140 = vector.broadcast %139 : vector<1x32xf32> to vector<64x32xf32>
    %141 = arith.addf %138, %140 : vector<64x32xf32>
    %142 = arith.addf %131, %141 : vector<64x32xf32>
    %143 = vector.broadcast %32 : vector<64x1xf32> to vector<64x32xf32>
    %144 = arith.mulf %143, %142 : vector<64x32xf32>
    %c0_99 = arith.constant 0 : index
    %c0_100 = arith.constant 0 : index
    %145 = vector.load %arg27[%c0_99, %c0_100] : memref<72x32xf32, #tpu.memory_space<vmem>>, vector<8x32xf32>
    tpu.vector_store %arg27[%c0_99, %c0_100], %126 {strides = array<i32>} : memref<72x32xf32, #tpu.memory_space<vmem>>, vector<8x32xf32>,
    %c8 = arith.constant 8 : index
    %c0_101 = arith.constant 0 : index
    %146 = vector.load %arg27[%c8, %c0_101] : memref<72x32xf32, #tpu.memory_space<vmem>>, vector<64x32xf32>
    tpu.vector_store %arg27[%c8, %c0_101], %144 {strides = array<i32>} : memref<72x32xf32, #tpu.memory_space<vmem>>, vector<64x32xf32>,
    return
  }
}

</mosaic_0001>

<llo_original>
// kernel: cdgon_ode_forward.1
$region0: #{cdgon_ode_forward.1}
  #allocation0 [shape = 'u32[]', space=smem, size = 0x4, offset = 0x4, fixed_abs, tag = 'smem constant byte address 0x4 - core index']
  #allocation1 [shape = 'u32[144,128]{1,0:T(1,128)}', space=vmem, size = 0x12000, scoped, tag = 'internal scratch']
  #allocation2 [shape = 'f32[1,1]{1,0:T(1,128)S(1)}', space=vmem, size = 0x200, scoped, tag = 'scoped memory for cdgon_ode_forward.1']
  #allocation3 [shape = 'f32[1,1]{1,0:T(1,128)S(1)}', space=vmem, size = 0x200, scoped, tag = 'scoped memory for cdgon_ode_forward.1']
  %s0 = inlined_call_operand.vmem [shape: f32[8,32], index: 0, kind: input, shape index: {}]
  %s1 = inlined_call_operand.vmem [shape: f32[64,32], index: 1, kind: input, shape index: {}]
  %s2 = inlined_call_operand.vmem [shape: f32[8,32], index: 2, kind: input, shape index: {}]
  %s3 = inlined_call_operand.vmem [shape: f32[8,64], index: 3, kind: input, shape index: {}]
  %s4 = inlined_call_operand.vmem [shape: f32[64,8], index: 4, kind: input, shape index: {}]
  %s5 = inlined_call_operand.vmem [shape: f32[64,8], index: 5, kind: input, shape index: {}]
  %s6 = inlined_call_operand.vmem [shape: f32[8,64], index: 6, kind: input, shape index: {}]
  %s7 = inlined_call_operand.vmem [shape: f32[32,16], index: 7, kind: input, shape index: {}]
  %s8 = inlined_call_operand.vmem [shape: f32[32,16], index: 8, kind: input, shape index: {}]
  %s9 = inlined_call_operand.vmem [shape: f32[1,16], index: 9, kind: input, shape index: {}]
  %s10 = inlined_call_operand.vmem [shape: f32[1,16], index: 10, kind: input, shape index: {}]
  %s11 = inlined_call_operand.<no memory space> [shape: f32[1,1], index: 11, kind: input, shape index: {}]
  %s12 = inlined_call_operand.vmem [shape: f32[32,32], index: 12, kind: input, shape index: {}]
  %s13 = inlined_call_operand.vmem [shape: f32[1,32], index: 13, kind: input, shape index: {}]
  %s14 = inlined_call_operand.vmem [shape: f32[32,32], index: 14, kind: input, shape index: {}]
  %s15 = inlined_call_operand.vmem [shape: f32[1,32], index: 15, kind: input, shape index: {}]
  %s16 = inlined_call_operand.vmem [shape: f32[32,32], index: 16, kind: input, shape index: {}]
  %s17 = inlined_call_operand.vmem [shape: f32[32,32], index: 17, kind: input, shape index: {}]
  %s18 = inlined_call_operand.vmem [shape: f32[1,32], index: 18, kind: input, shape index: {}]
  %s19 = inlined_call_operand.vmem [shape: f32[32,32], index: 19, kind: input, shape index: {}]
  %s20 = inlined_call_operand.vmem [shape: f32[32,32], index: 20, kind: input, shape index: {}]
  %s21 = inlined_call_operand.vmem [shape: f32[32,32], index: 21, kind: input, shape index: {}]
  %s22 = inlined_call_operand.vmem [shape: f32[1,32], index: 22, kind: input, shape index: {}]
  %s23 = inlined_call_operand.vmem [shape: f32[32,16], index: 23, kind: input, shape index: {}]
  %s24 = inlined_call_operand.vmem [shape: f32[1,16], index: 24, kind: input, shape index: {}]
  %s25 = inlined_call_operand.vmem [shape: f32[1,16], index: 25, kind: input, shape index: {}]
  %s26 = inlined_call_operand.<no memory space> [shape: f32[1,1], index: 26, kind: input, shape index: {}]
  %s27 = inlined_call_operand.vmem [shape: f32[72,32], index: 27, kind: output, shape index: {0}]
  %s28 = inlined_call_operand.vmem [shape: f32[64,1], index: 28, kind: output, shape index: {1}]
  %29 = xla_tuple %s27, %s28
  %s30 = sld [smem:[#allocation0]]
  $region126: #{cdgon_ode_forward.1} parent=0
    _
  %s32 = ssub.s32 1, %s30
  %s33 = scalar_select 0, %s32, %s30
  %v34 = vstv %s11
  %35 = vst [vmem:[#allocation2] sm:$0x1] %v34
  %v36 = vstv %s26
  %37 = vst [vmem:[#allocation3] sm:$0x1] %v36
  // Predicated region
  $region2: #{cdgon_ode_forward.1} parent=0 // pred_check
    _
  $region3: #{cdgon_ode_forward.1} parent=0 // pred_check_branch
    %39 = sbr.rel (0) target = $region5
  $region4: #{cdgon_ode_forward.1} parent=0 // pred_region
    _
  $region5: #{cdgon_ode_forward.1} parent=0 // pred_fallthru
    _
  // Predicated region
  $region6: #{cdgon_ode_forward.1} parent=0 // pred_check
    _
  $region7: #{cdgon_ode_forward.1} parent=0 // pred_check_branch
    %41 = sbr.rel (0) target = $region9
  $region8: #{cdgon_ode_forward.1} parent=0 // pred_region
    _
  $region9: #{cdgon_ode_forward.1} parent=0 // pred_fallthru
    _
  // Predicated region
  $region10: #{cdgon_ode_forward.1} parent=0 // pred_check
    _
  $region11: #{cdgon_ode_forward.1} parent=0 // pred_check_branch
    %43 = sbr.rel (0) target = $region13
  $region12: #{cdgon_ode_forward.1} parent=0 // pred_region
    _
  $region13: #{cdgon_ode_forward.1} parent=0 // pred_fallthru
    _
  // Predicated region
  $region14: #{cdgon_ode_forward.1} parent=0 // pred_check
    _
  $region15: #{cdgon_ode_forward.1} parent=0 // pred_check_branch
    %45 = sbr.rel (0) target = $region17
  $region16: #{cdgon_ode_forward.1} parent=0 // pred_region
    _
  $region17: #{cdgon_ode_forward.1} parent=0 // pred_fallthru
    _
  // Predicated region
  $region18: #{cdgon_ode_forward.1} parent=0 // pred_check
    _
  $region19: #{cdgon_ode_forward.1} parent=0 // pred_check_branch
    %47 = sbr.rel (0) target = $region21
  $region20: #{cdgon_ode_forward.1} parent=0 // pred_region
    _
  $region21: #{cdgon_ode_forward.1} parent=0 // pred_fallthru
    _
  // Predicated region
  $region22: #{cdgon_ode_forward.1} parent=0 // pred_check
    _
  $region23: #{cdgon_ode_forward.1} parent=0 // pred_check_branch
    %49 = sbr.rel (0) target = $region25
  $region24: #{cdgon_ode_forward.1} parent=0 // pred_region
    _
  $region25: #{cdgon_ode_forward.1} parent=0 // pred_fallthru
    _
  // Predicated region
  $region26: #{cdgon_ode_forward.1} parent=0 // pred_check
    _
  $region27: #{cdgon_ode_forward.1} parent=0 // pred_check_branch
    %51 = sbr.rel (0) target = $region29
  $region28: #{cdgon_ode_forward.1} parent=0 // pred_region
    _
  $region29: #{cdgon_ode_forward.1} parent=0 // pred_fallthru
    _
  // Predicated region
  $region30: #{cdgon_ode_forward.1} parent=0 // pred_check
    _
  $region31: #{cdgon_ode_forward.1} parent=0 // pred_check_branch
    %53 = sbr.rel (0) target = $region33
  $region32: #{cdgon_ode_forward.1} parent=0 // pred_region
    _
  $region33: #{cdgon_ode_forward.1} parent=0 // pred_fallthru
    _
  // Predicated region
  $region34: #{cdgon_ode_forward.1} parent=0 // pred_check
    _
  $region35: #{cdgon_ode_forward.1} parent=0 // pred_check_branch
    %55 = sbr.rel (0) target = $region37
  $region36: #{cdgon_ode_forward.1} parent=0 // pred_region
    _
  $region37: #{cdgon_ode_forward.1} parent=0 // pred_fallthru
    _
  // Predicated region
  $region38: #{cdgon_ode_forward.1} parent=0 // pred_check
    _
  $region39: #{cdgon_ode_forward.1} parent=0 // pred_check_branch
    %57 = sbr.rel (0) target = $region41
  $region40: #{cdgon_ode_forward.1} parent=0 // pred_region
    _
  $region41: #{cdgon_ode_forward.1} parent=0 // pred_fallthru
    _
  // Predicated region
  $region42: #{cdgon_ode_forward.1} parent=0 // pred_check
    _
  $region43: #{cdgon_ode_forward.1} parent=0 // pred_check_branch
    %59 = sbr.rel (0) target = $region45
  $region44: #{cdgon_ode_forward.1} parent=0 // pred_region
    _
  $region45: #{cdgon_ode_forward.1} parent=0 // pred_fallthru
    _
  // Predicated region
  $region46: #{cdgon_ode_forward.1} parent=0 // pred_check
    _
  $region47: #{cdgon_ode_forward.1} parent=0 // pred_check_branch
    %61 = sbr.rel (0) target = $region49
  $region48: #{cdgon_ode_forward.1} parent=0 // pred_region
    _
  $region49: #{cdgon_ode_forward.1} parent=0 // pred_fallthru
    _
  // Predicated region
  $region50: #{cdgon_ode_forward.1} parent=0 // pred_check
    _
  $region51: #{cdgon_ode_forward.1} parent=0 // pred_check_branch
    %63 = sbr.rel (0) target = $region53
  $region52: #{cdgon_ode_forward.1} parent=0 // pred_region
    _
  $region53: #{cdgon_ode_forward.1} parent=0 // pred_fallthru
    _
  // Predicated region
  $region54: #{cdgon_ode_forward.1} parent=0 // pred_check
    _
  $region55: #{cdgon_ode_forward.1} parent=0 // pred_check_branch
    %65 = sbr.rel (0) target = $region57
  $region56: #{cdgon_ode_forward.1} parent=0 // pred_region
    _
  $region57: #{cdgon_ode_forward.1} parent=0 // pred_fallthru
    _
  // Predicated region
  $region58: #{cdgon_ode_forward.1} parent=0 // pred_check
    _
  $region59: #{cdgon_ode_forward.1} parent=0 // pred_check_branch
    %67 = sbr.rel (0) target = $region61
  $region60: #{cdgon_ode_forward.1} parent=0 // pred_region
    _
  $region61: #{cdgon_ode_forward.1} parent=0 // pred_fallthru
    _
  // Predicated region
  $region62: #{cdgon_ode_forward.1} parent=0 // pred_check
    _
  $region63: #{cdgon_ode_forward.1} parent=0 // pred_check_branch
    %69 = sbr.rel (0) target = $region65
  $region64: #{cdgon_ode_forward.1} parent=0 // pred_region
    _
  $region65: #{cdgon_ode_forward.1} parent=0 // pred_fallthru
    _
  // Predicated region
  $region66: #{cdgon_ode_forward.1} parent=0 // pred_check
    _
  $region67: #{cdgon_ode_forward.1} parent=0 // pred_check_branch
    %71 = sbr.rel (0) target = $region69
  $region68: #{cdgon_ode_forward.1} parent=0 // pred_region
    _
  $region69: #{cdgon_ode_forward.1} parent=0 // pred_fallthru
    _
  // Predicated region
  $region70: #{cdgon_ode_forward.1} parent=0 // pred_check
    _
  $region71: #{cdgon_ode_forward.1} parent=0 // pred_check_branch
    %73 = sbr.rel (0) target = $region73
  $region72: #{cdgon_ode_forward.1} parent=0 // pred_region
    _
  $region73: #{cdgon_ode_forward.1} parent=0 // pred_fallthru
    _
  // Predicated region
  $region74: #{cdgon_ode_forward.1} parent=0 // pred_check
    _
  $region75: #{cdgon_ode_forward.1} parent=0 // pred_check_branch
    %75 = sbr.rel (0) target = $region77
  $region76: #{cdgon_ode_forward.1} parent=0 // pred_region
    _
  $region77: #{cdgon_ode_forward.1} parent=0 // pred_fallthru
    _
  // Predicated region
  $region78: #{cdgon_ode_forward.1} parent=0 // pred_check
    _
  $region79: #{cdgon_ode_forward.1} parent=0 // pred_check_branch
    %77 = sbr.rel (0) target = $region81
  $region80: #{cdgon_ode_forward.1} parent=0 // pred_region
    _
  $region81: #{cdgon_ode_forward.1} parent=0 // pred_fallthru
    _
  // Predicated region
  $region82: #{cdgon_ode_forward.1} parent=0 // pred_check
    _
  $region83: #{cdgon_ode_forward.1} parent=0 // pred_check_branch
    %79 = sbr.rel (0) target = $region85
  $region84: #{cdgon_ode_forward.1} parent=0 // pred_region
    _
  $region85: #{cdgon_ode_forward.1} parent=0 // pred_fallthru
    _
  // Predicated region
  $region86: #{cdgon_ode_forward.1} parent=0 // pred_check
    _
  $region87: #{cdgon_ode_forward.1} parent=0 // pred_check_branch
    %81 = sbr.rel (0) target = $region89
  $region88: #{cdgon_ode_forward.1} parent=0 // pred_region
    _
  $region89: #{cdgon_ode_forward.1} parent=0 // pred_fallthru
    _
  // Predicated region
  $region90: #{cdgon_ode_forward.1} parent=0 // pred_check
    _
  $region91: #{cdgon_ode_forward.1} parent=0 // pred_check_branch
    %83 = sbr.rel (0) target = $region93
  $region92: #{cdgon_ode_forward.1} parent=0 // pred_region
    _
  $region93: #{cdgon_ode_forward.1} parent=0 // pred_fallthru
    _
  // Predicated region
  $region94: #{cdgon_ode_forward.1} parent=0 // pred_check
    _
  $region95: #{cdgon_ode_forward.1} parent=0 // pred_check_branch
    %85 = sbr.rel (0) target = $region97
  $region96: #{cdgon_ode_forward.1} parent=0 // pred_region
    _
  $region97: #{cdgon_ode_forward.1} parent=0 // pred_fallthru
    _
  // Predicated region
  $region98: #{cdgon_ode_forward.1} parent=0 // pred_check
    _
  $region99: #{cdgon_ode_forward.1} parent=0 // pred_check_branch
    %87 = sbr.rel (0) target = $region101
  $region100: #{cdgon_ode_forward.1} parent=0 // pred_region
    _
  $region101: #{cdgon_ode_forward.1} parent=0 // pred_fallthru
    _
  // Predicated region
  $region102: #{cdgon_ode_forward.1} parent=0 // pred_check
    _
  $region103: #{cdgon_ode_forward.1} parent=0 // pred_check_branch
    %89 = sbr.rel (0) target = $region105
  $region104: #{cdgon_ode_forward.1} parent=0 // pred_region
    _
  $region105: #{cdgon_ode_forward.1} parent=0 // pred_fallthru
    _
  // Predicated region
  $region106: #{cdgon_ode_forward.1} parent=0 // pred_check
    _
  $region107: #{cdgon_ode_forward.1} parent=0 // pred_check_branch
    %91 = sbr.rel (0) target = $region109
  $region108: #{cdgon_ode_forward.1} parent=0 // pred_region
    _
  $region109: #{cdgon_ode_forward.1} parent=0 // pred_fallthru
    _
  %v92 = vld [vmem:[%s0] sm:$0xff]
  %v93 = vld [vmem:[%s1] sm:$0xff]
  %v94 = vld [vmem:[%s1 + $0x8] sm:$0xff]
  %v95 = vld [vmem:[%s1 + $0x10] sm:$0xff]
  %v96 = vld [vmem:[%s1 + $0x18] sm:$0xff]
  %v97 = vld [vmem:[%s1 + $0x20] sm:$0xff]
  %v98 = vld [vmem:[%s1 + $0x28] sm:$0xff]
  %v99 = vld [vmem:[%s1 + $0x30] sm:$0xff]
  %v100 = vld [vmem:[%s1 + $0x38] sm:$0xff]
  %v101 = vld [vmem:[%s2] sm:$0xff]
  %v102 = vld [vmem:[%s4] sm:$0xff]
  %v103 = vld [vmem:[%s4 + $0x8] sm:$0xff]
  %v104 = vld [vmem:[%s4 + $0x10] sm:$0xff]
  %v105 = vld [vmem:[%s4 + $0x18] sm:$0xff]
  %v106 = vld [vmem:[%s4 + $0x20] sm:$0xff]
  %v107 = vld [vmem:[%s4 + $0x28] sm:$0xff]
  %v108 = vld [vmem:[%s4 + $0x30] sm:$0xff]
  %v109 = vld [vmem:[%s4 + $0x38] sm:$0xff]
  %v110 = vld [vmem:[%s5] sm:$0xff]
  %v111 = vld [vmem:[%s5 + $0x8] sm:$0xff]
  %v112 = vld [vmem:[%s5 + $0x10] sm:$0xff]
  %v113 = vld [vmem:[%s5 + $0x18] sm:$0xff]
  %v114 = vld [vmem:[%s5 + $0x20] sm:$0xff]
  %v115 = vld [vmem:[%s5 + $0x28] sm:$0xff]
  %v116 = vld [vmem:[%s5 + $0x30] sm:$0xff]
  %v117 = vld [vmem:[%s5 + $0x38] sm:$0xff]
  %v118 = vld [vmem:[%s6] sm:$0xff]
  %v119 = vld [vmem:[%s7] sm:$0xff]
  %v120 = vld [vmem:[%s7 + $0x8] sm:$0xff]
  %v121 = vld [vmem:[%s7 + $0x10] sm:$0xff]
  %v122 = vld [vmem:[%s7 + $0x18] sm:$0xff]
  %vm123 = vcmask 261120
  %v125 = vsel %vm123, %v92, 0
  %127 = vmatprep.subr.mxu0 0.0
  %128 = vmatpush1.msra.mxu0 %v119
  %129 = vmatprep.subr.mxu0 0.0
  %130 = vmatpush1.msra.mxu0 %v120
  %131 = vmatprep.subr.mxu0 0.0
  %132 = vmatpush1.msra.mxu0 %v121
  %133 = vmatprep.subr.mxu0 0.0
  %134 = vmatpush1.msra.mxu0 %v122
  %135 = vmatprep.subr.mxu0 0.0
  %136 = vmatpush1.msra.mxu0 0.0
  %137 = vmatprep.subr.mxu0 0.0
  %138 = vmatpush1.msra.mxu0 0.0
  %139 = vmatprep.subr.mxu0 0.0
  %140 = vmatpush1.msra.mxu0 0.0
  %141 = vmatprep.subr.mxu0 0.0
  %142 = vmatpush1.msra.mxu0 0.0
  %143 = vmatprep.subr.mxu0 0.0
  %144 = vmatpush1.msra.mxu0 0.0
  %145 = vmatprep.subr.mxu0 0.0
  %146 = vmatpush1.msra.mxu0 0.0
  %147 = vmatprep.subr.mxu0 0.0
  %148 = vmatpush1.msra.mxu0 0.0
  %149 = vmatprep.subr.mxu0 0.0
  %150 = vmatpush1.msra.mxu0 0.0
  %151 = vmatprep.subr.mxu0 0.0
  %152 = vmatpush1.msra.mxu0 0.0
  %153 = vmatprep.subr.mxu0 0.0
  %154 = vmatpush1.msra.mxu0 0.0
  %155 = vmatprep.subr.mxu0 0.0
  %156 = vmatpush1.msra.mxu0 0.0
  %157 = vmatprep.subr.mxu0 0.0
  %158 = vmatpush1.msra.mxu0 0.0
  %159 = vmatprep.subr.mxu0 0.0
  %160 = vmatpush1.msra.mxu0 0.0
  %161 = vmatprep.subr.mxu0 0.0
  %162 = vmatpush1.msra.mxu0 0.0
  %163 = vmatprep.subr.mxu0 0.0
  %164 = vmatpush1.msra.mxu0 0.0
  %165 = vmatprep.subr.mxu0 0.0
  %166 = vmatpush1.msra.mxu0 0.0
  %167 = vmatprep.subr.mxu0 0.0
  %168 = vmatpush1.msra.mxu0 0.0
  %169 = vmatprep.subr.mxu0 0.0
  %170 = vmatpush1.msra.mxu0 0.0
  %171 = vmatprep.subr.mxu0 0.0
  %172 = vmatpush1.msra.mxu0 0.0
  %173 = vmatprep.subr.mxu0 0.0
  %174 = vmatpush1.msra.mxu0 0.0
  %175 = vmatprep.subr.mxu0 0.0
  %176 = vmatpush1.msra.mxu0 0.0
  %177 = vmatprep.subr.mxu0 0.0
  %178 = vmatpush1.msra.mxu0 0.0
  %179 = vmatprep.subr.mxu0 0.0
  %180 = vmatpush1.msra.mxu0 0.0
  %181 = vmatprep.subr.mxu0 0.0
  %182 = vmatpush1.msra.mxu0 0.0
  %183 = vmatprep.subr.mxu0 0.0
  %184 = vmatpush1.msra.mxu0 0.0
  %185 = vmatprep.subr.mxu0 0.0
  %186 = vmatpush1.msra.mxu0 0.0
  %187 = vmatprep.subr.mxu0 0.0
  %188 = vmatpush1.msra.mxu0 0.0
  %189 = vmatprep.subr.mxu0 0.0
  %190 = vmatpush1.msra.mxu0 0.0
  %191 = vmatprep.mubr.f32.mxu0 0.0
  %192 = vmatmul.mubr.f32.gmra.mrb[0].mxu0 %v125
  %v193 = vpop.f32.mrb[0].mxu0
  %v194 = vadd.f32 0.0, %v193
  %v195 = vpop.f32.mrb[0].mxu0
  %196 = vdwg.mxu0
  %v197 = vld [vmem:[%s8] sm:$0xff]
  %v198 = vld [vmem:[%s8 + $0x8] sm:$0xff]
  %v199 = vld [vmem:[%s8 + $0x10] sm:$0xff]
  %v200 = vld [vmem:[%s8 + $0x18] sm:$0xff]
  %201 = vmatprep.subr.mxu0 0.0
  %202 = vmatpush1.msra.mxu0 %v197
  %203 = vmatprep.subr.mxu0 0.0
  %204 = vmatpush1.msra.mxu0 %v198
  %205 = vmatprep.subr.mxu0 0.0
  %206 = vmatpush1.msra.mxu0 %v199
  %207 = vmatprep.subr.mxu0 0.0
  %208 = vmatpush1.msra.mxu0 %v200
  %209 = vmatprep.subr.mxu0 0.0
  %210 = vmatpush1.msra.mxu0 0.0
  %211 = vmatprep.subr.mxu0 0.0
  %212 = vmatpush1.msra.mxu0 0.0
  %213 = vmatprep.subr.mxu0 0.0
  %214 = vmatpush1.msra.mxu0 0.0
  %215 = vmatprep.subr.mxu0 0.0
  %216 = vmatpush1.msra.mxu0 0.0
  %217 = vmatprep.subr.mxu0 0.0
  %218 = vmatpush1.msra.mxu0 0.0
  %219 = vmatprep.subr.mxu0 0.0
  %220 = vmatpush1.msra.mxu0 0.0
  %221 = vmatprep.subr.mxu0 0.0
  %222 = vmatpush1.msra.mxu0 0.0
  %223 = vmatprep.subr.mxu0 0.0
  %224 = vmatpush1.msra.mxu0 0.0
  %225 = vmatprep.subr.mxu0 0.0
  %226 = vmatpush1.msra.mxu0 0.0
  %227 = vmatprep.subr.mxu0 0.0
  %228 = vmatpush1.msra.mxu0 0.0
  %229 = vmatprep.subr.mxu0 0.0
  %230 = vmatpush1.msra.mxu0 0.0
  %231 = vmatprep.subr.mxu0 0.0
  %232 = vmatpush1.msra.mxu0 0.0
  %233 = vmatprep.subr.mxu0 0.0
  %234 = vmatpush1.msra.mxu0 0.0
  %235 = vmatprep.subr.mxu0 0.0
  %236 = vmatpush1.msra.mxu0 0.0
  %237 = vmatprep.subr.mxu0 0.0
  %238 = vmatpush1.msra.mxu0 0.0
  %239 = vmatprep.subr.mxu0 0.0
  %240 = vmatpush1.msra.mxu0 0.0
  %241 = vmatprep.subr.mxu0 0.0
  %242 = vmatpush1.msra.mxu0 0.0
  %243 = vmatprep.subr.mxu0 0.0
  %244 = vmatpush1.msra.mxu0 0.0
  %245 = vmatprep.subr.mxu0 0.0
  %246 = vmatpush1.msra.mxu0 0.0
  %247 = vmatprep.subr.mxu0 0.0
  %248 = vmatpush1.msra.mxu0 0.0
  %249 = vmatprep.subr.mxu0 0.0
  %250 = vmatpush1.msra.mxu0 0.0
  %251 = vmatprep.subr.mxu0 0.0
  %252 = vmatpush1.msra.mxu0 0.0
  %253 = vmatprep.subr.mxu0 0.0
  %254 = vmatpush1.msra.mxu0 0.0
  %255 = vmatprep.subr.mxu0 0.0
  %256 = vmatpush1.msra.mxu0 0.0
  %257 = vmatprep.subr.mxu0 0.0
  %258 = vmatpush1.msra.mxu0 0.0
  %259 = vmatprep.subr.mxu0 0.0
  %260 = vmatpush1.msra.mxu0 0.0
  %261 = vmatprep.subr.mxu0 0.0
  %262 = vmatpush1.msra.mxu0 0.0
  %263 = vmatprep.subr.mxu0 0.0
  %264 = vmatpush1.msra.mxu0 0.0
  %265 = vmatprep.mubr.f32.mxu0 0.0
  %266 = vmatmul.mubr.f32.gmra.mrb[0].mxu0 %v125
  %v267 = vpop.f32.mrb[0].mxu0
  %v268 = vadd.f32 0.0, %v267
  %v269 = vpop.f32.mrb[0].mxu0
  %270 = vdwg.mxu0
  %vm271 = vcmask 64512
  %v273 = vsel %vm271, %v110, 0
  %v276 = vsel %vm271, %v111, 0
  %v279 = vsel %vm271, %v112, 0
  %v282 = vsel %vm271, %v113, 0
  %v285 = vsel %vm271, %v114, 0
  %v288 = vsel %vm271, %v115, 0
  %v291 = vsel %vm271, %v116, 0
  %v294 = vsel %vm271, %v117, 0
  %296 = vmatprep.subr.mxu0 0.0
  %297 = vmatpush1.msra.mxu0 %v268
  %298 = vmatprep.subr.mxu0 0.0
  %299 = vmatpush1.msra.mxu0 0.0
  %300 = vmatprep.subr.mxu0 0.0
  %301 = vmatpush1.msra.mxu0 0.0
  %302 = vmatprep.subr.mxu0 0.0
  %303 = vmatpush1.msra.mxu0 0.0
  %304 = vmatprep.subr.mxu0 0.0
  %305 = vmatpush1.msra.mxu0 0.0
  %306 = vmatprep.subr.mxu0 0.0
  %307 = vmatpush1.msra.mxu0 0.0
  %308 = vmatprep.subr.mxu0 0.0
  %309 = vmatpush1.msra.mxu0 0.0
  %310 = vmatprep.subr.mxu0 0.0
  %311 = vmatpush1.msra.mxu0 0.0
  %312 = vmatprep.subr.mxu0 0.0
  %313 = vmatpush1.msra.mxu0 0.0
  %314 = vmatprep.subr.mxu0 0.0
  %315 = vmatpush1.msra.mxu0 0.0
  %316 = vmatprep.subr.mxu0 0.0
  %317 = vmatpush1.msra.mxu0 0.0
  %318 = vmatprep.subr.mxu0 0.0
  %319 = vmatpush1.msra.mxu0 0.0
  %320 = vmatprep.subr.mxu0 0.0
  %321 = vmatpush1.msra.mxu0 0.0
  %322 = vmatprep.subr.mxu0 0.0
  %323 = vmatpush1.msra.mxu0 0.0
  %324 = vmatprep.subr.mxu0 0.0
  %325 = vmatpush1.msra.mxu0 0.0
  %326 = vmatprep.subr.mxu0 0.0
  %327 = vmatpush1.msra.mxu0 0.0
  %328 = vmatprep.subr.mxu0 0.0
  %329 = vmatpush1.msra.mxu0 0.0
  %330 = vmatprep.subr.mxu0 0.0
  %331 = vmatpush1.msra.mxu0 0.0
  %332 = vmatprep.subr.mxu0 0.0
  %333 = vmatpush1.msra.mxu0 0.0
  %334 = vmatprep.subr.mxu0 0.0
  %335 = vmatpush1.msra.mxu0 0.0
  %336 = vmatprep.subr.mxu0 0.0
  %337 = vmatpush1.msra.mxu0 0.0
  %338 = vmatprep.subr.mxu0 0.0
  %339 = vmatpush1.msra.mxu0 0.0
  %340 = vmatprep.subr.mxu0 0.0
  %341 = vmatpush1.msra.mxu0 0.0
  %342 = vmatprep.subr.mxu0 0.0
  %343 = vmatpush1.msra.mxu0 0.0
  %344 = vmatprep.subr.mxu0 0.0
  %345 = vmatpush1.msra.mxu0 0.0
  %346 = vmatprep.subr.mxu0 0.0
  %347 = vmatpush1.msra.mxu0 0.0
  %348 = vmatprep.subr.mxu0 0.0
  %349 = vmatpush1.msra.mxu0 0.0
  %350 = vmatprep.subr.mxu0 0.0
  %351 = vmatpush1.msra.mxu0 0.0
  %352 = vmatprep.subr.mxu0 0.0
  %353 = vmatpush1.msra.mxu0 0.0
  %354 = vmatprep.subr.mxu0 0.0
  %355 = vmatpush1.msra.mxu0 0.0
  %356 = vmatprep.subr.mxu0 0.0
  %357 = vmatpush1.msra.mxu0 0.0
  %358 = vmatprep.subr.mxu0 0.0
  %359 = vmatpush1.msra.mxu0 0.0
  %360 = vmatprep.mubr.f32.mxu0 0.0
  %361 = vmatmul.mubr.f32.gmra.mrb[0].mxu0 %v273
  %v362 = vpop.f32.mrb[0].mxu0
  %v363 = vadd.f32 0.0, %v362
  %v364 = vpop.f32.mrb[0].mxu0
  %365 = vmatprep.mubr.f32.mxu0 0.0
  %366 = vmatmul.mubr.f32.gmra.mrb[0].mxu0 %v276
  %v367 = vpop.f32.mrb[0].mxu0
  %v368 = vadd.f32 0.0, %v367
  %v369 = vpop.f32.mrb[0].mxu0
  %370 = vmatprep.mubr.f32.mxu0 0.0
  %371 = vmatmul.mubr.f32.gmra.mrb[0].mxu0 %v279
  %v372 = vpop.f32.mrb[0].mxu0
  %v373 = vadd.f32 0.0, %v372
  %v374 = vpop.f32.mrb[0].mxu0
  %375 = vmatprep.mubr.f32.mxu0 0.0
  %376 = vmatmul.mubr.f32.gmra.mrb[0].mxu0 %v282
  %v377 = vpop.f32.mrb[0].mxu0
  %v378 = vadd.f32 0.0, %v377
  %v379 = vpop.f32.mrb[0].mxu0
  %380 = vmatprep.mubr.f32.mxu0 0.0
  %381 = vmatmul.mubr.f32.gmra.mrb[0].mxu0 %v285
  %v382 = vpop.f32.mrb[0].mxu0
  %v383 = vadd.f32 0.0, %v382
  %v384 = vpop.f32.mrb[0].mxu0
  %385 = vmatprep.mubr.f32.mxu0 0.0
  %386 = vmatmul.mubr.f32.gmra.mrb[0].mxu0 %v288
  %v387 = vpop.f32.mrb[0].mxu0
  %v388 = vadd.f32 0.0, %v387
  %v389 = vpop.f32.mrb[0].mxu0
  %390 = vmatprep.mubr.f32.mxu0 0.0
  %391 = vmatmul.mubr.f32.gmra.mrb[0].mxu0 %v291
  %v392 = vpop.f32.mrb[0].mxu0
  %v393 = vadd.f32 0.0, %v392
  %v394 = vpop.f32.mrb[0].mxu0
  %395 = vmatprep.mubr.f32.mxu0 0.0
  %396 = vmatmul.mubr.f32.gmra.mrb[0].mxu0 %v294
  %v397 = vpop.f32.mrb[0].mxu0
  %v398 = vadd.f32 0.0, %v397
  %v399 = vpop.f32.mrb[0].mxu0
  %400 = vdwg.mxu0
  %v402 = vsel %vm271, %v102, 0
  %v405 = vsel %vm271, %v103, 0
  %v408 = vsel %vm271, %v104, 0
  %v411 = vsel %vm271, %v105, 0
  %v414 = vsel %vm271, %v106, 0
  %v417 = vsel %vm271, %v107, 0
  %v420 = vsel %vm271, %v108, 0
  %v423 = vsel %vm271, %v109, 0
  %425 = vmatprep.subr.mxu0 0.0
  %426 = vmatpush1.msra.mxu0 %v194
  %427 = vmatprep.subr.mxu0 0.0
  %428 = vmatpush1.msra.mxu0 0.0
  %429 = vmatprep.subr.mxu0 0.0
  %430 = vmatpush1.msra.mxu0 0.0
  %431 = vmatprep.subr.mxu0 0.0
  %432 = vmatpush1.msra.mxu0 0.0
  %433 = vmatprep.subr.mxu0 0.0
  %434 = vmatpush1.msra.mxu0 0.0
  %435 = vmatprep.subr.mxu0 0.0
  %436 = vmatpush1.msra.mxu0 0.0
  %437 = vmatprep.subr.mxu0 0.0
  %438 = vmatpush1.msra.mxu0 0.0
  %439 = vmatprep.subr.mxu0 0.0
  %440 = vmatpush1.msra.mxu0 0.0
  %441 = vmatprep.subr.mxu0 0.0
  %442 = vmatpush1.msra.mxu0 0.0
  %443 = vmatprep.subr.mxu0 0.0
  %444 = vmatpush1.msra.mxu0 0.0
  %445 = vmatprep.subr.mxu0 0.0
  %446 = vmatpush1.msra.mxu0 0.0
  %447 = vmatprep.subr.mxu0 0.0
  %448 = vmatpush1.msra.mxu0 0.0
  %449 = vmatprep.subr.mxu0 0.0
  %450 = vmatpush1.msra.mxu0 0.0
  %451 = vmatprep.subr.mxu0 0.0
  %452 = vmatpush1.msra.mxu0 0.0
  %453 = vmatprep.subr.mxu0 0.0
  %454 = vmatpush1.msra.mxu0 0.0
  %455 = vmatprep.subr.mxu0 0.0
  %456 = vmatpush1.msra.mxu0 0.0
  %457 = vmatprep.subr.mxu0 0.0
  %458 = vmatpush1.msra.mxu0 0.0
  %459 = vmatprep.subr.mxu0 0.0
  %460 = vmatpush1.msra.mxu0 0.0
  %461 = vmatprep.subr.mxu0 0.0
  %462 = vmatpush1.msra.mxu0 0.0
  %463 = vmatprep.subr.mxu0 0.0
  %464 = vmatpush1.msra.mxu0 0.0
  %465 = vmatprep.subr.mxu0 0.0
  %466 = vmatpush1.msra.mxu0 0.0
  %467 = vmatprep.subr.mxu0 0.0
  %468 = vmatpush1.msra.mxu0 0.0
  %469 = vmatprep.subr.mxu0 0.0
  %470 = vmatpush1.msra.mxu0 0.0
  %471 = vmatprep.subr.mxu0 0.0
  %472 = vmatpush1.msra.mxu0 0.0
  %473 = vmatprep.subr.mxu0 0.0
  %474 = vmatpush1.msra.mxu0 0.0
  %475 = vmatprep.subr.mxu0 0.0
  %476 = vmatpush1.msra.mxu0 0.0
  %477 = vmatprep.subr.mxu0 0.0
  %478 = vmatpush1.msra.mxu0 0.0
  %479 = vmatprep.subr.mxu0 0.0
  %480 = vmatpush1.msra.mxu0 0.0
  %481 = vmatprep.subr.mxu0 0.0
  %482 = vmatpush1.msra.mxu0 0.0
  %483 = vmatprep.subr.mxu0 0.0
  %484 = vmatpush1.msra.mxu0 0.0
  %485 = vmatprep.subr.mxu0 0.0
  %486 = vmatpush1.msra.mxu0 0.0
  %487 = vmatprep.subr.mxu0 0.0
  %488 = vmatpush1.msra.mxu0 0.0
  %489 = vmatprep.mubr.f32.mxu0 0.0
  %490 = vmatmul.mubr.f32.gmra.mrb[0].mxu0 %v402
  %v491 = vpop.f32.mrb[0].mxu0
  %v492 = vadd.f32 %v363, %v491
  %v493 = vpop.f32.mrb[0].mxu0
  %494 = vmatprep.mubr.f32.mxu0 0.0
  %495 = vmatmul.mubr.f32.gmra.mrb[0].mxu0 %v405
  %v496 = vpop.f32.mrb[0].mxu0
  %v497 = vadd.f32 %v368, %v496
  %v498 = vpop.f32.mrb[0].mxu0
  %499 = vmatprep.mubr.f32.mxu0 0.0
  %500 = vmatmul.mubr.f32.gmra.mrb[0].mxu0 %v408
  %v501 = vpop.f32.mrb[0].mxu0
  %v502 = vadd.f32 %v373, %v501
  %v503 = vpop.f32.mrb[0].mxu0
  %504 = vmatprep.mubr.f32.mxu0 0.0
  %505 = vmatmul.mubr.f32.gmra.mrb[0].mxu0 %v411
  %v506 = vpop.f32.mrb[0].mxu0
  %v507 = vadd.f32 %v378, %v506
  %v508 = vpop.f32.mrb[0].mxu0
  %509 = vmatprep.mubr.f32.mxu0 0.0
  %510 = vmatmul.mubr.f32.gmra.mrb[0].mxu0 %v414
  %v511 = vpop.f32.mrb[0].mxu0
  %v512 = vadd.f32 %v383, %v511
  %v513 = vpop.f32.mrb[0].mxu0
  %514 = vmatprep.mubr.f32.mxu0 0.0
  %515 = vmatmul.mubr.f32.gmra.mrb[0].mxu0 %v417
  %v516 = vpop.f32.mrb[0].mxu0
  %v517 = vadd.f32 %v388, %v516
  %v518 = vpop.f32.mrb[0].mxu0
  %519 = vmatprep.mubr.f32.mxu0 0.0
  %520 = vmatmul.mubr.f32.gmra.mrb[0].mxu0 %v420
  %v521 = vpop.f32.mrb[0].mxu0
  %v522 = vadd.f32 %v393, %v521
  %v523 = vpop.f32.mrb[0].mxu0
  %524 = vmatprep.mubr.f32.mxu0 0.0
  %525 = vmatmul.mubr.f32.gmra.mrb[0].mxu0 %v423
  %v526 = vpop.f32.mrb[0].mxu0
  %v527 = vadd.f32 %v398, %v526
  %v528 = vpop.f32.mrb[0].mxu0
  %529 = vdwg.mxu0
  %v530 = vld [vmem:[%s9] sm:$0x1]
  %v532 = vlaneseq
  %v533 = vshrl.u32 %v532, 7
  %v534 = vsub.s32 0, %v533
  %v535 = vrot.slane %v530, %v534
  %v537 = vadd.f32 %v492, %v535
  %v538 = vadd.f32 %v497, %v535
  %v539 = vadd.f32 %v502, %v535
  %v540 = vadd.f32 %v507, %v535
  %v541 = vadd.f32 %v512, %v535
  %v542 = vadd.f32 %v517, %v535
  %v543 = vadd.f32 %v522, %v535
  %v544 = vadd.f32 %v527, %v535
  %v545 = vmax.f32 %v537, 0.0
  %v546 = vmax.f32 %v538, 0.0
  %v547 = vmax.f32 %v539, 0.0
  %v548 = vmax.f32 %v540, 0.0
  %v549 = vmax.f32 %v541, 0.0
  %v550 = vmax.f32 %v542, 0.0
  %v551 = vmax.f32 %v543, 0.0
  %v552 = vmax.f32 %v544, 0.0
  %v553 = vld [vmem:[%s10] sm:$0x1]
  %v555 = vlaneseq
  %v556 = vshrl.u32 %v555, 7
  %v557 = vsub.s32 0, %v556
  %v558 = vrot.slane %v553, %v557
  %v560 = vmul.f32 %v545, %v558
  %v561 = vmul.f32 %v546, %v558
  %v562 = vmul.f32 %v547, %v558
  %v563 = vmul.f32 %v548, %v558
  %v564 = vmul.f32 %v549, %v558
  %v565 = vmul.f32 %v550, %v558
  %v566 = vmul.f32 %v551, %v558
  %v567 = vmul.f32 %v552, %v558
  %vm568 = vcmask 130048
  %v569 = vsel %vm568, %v560, 0.0
  %570 = vadd.xlane.f32.xlu0 %v569
  %v571 = vpop.xlane.xlu0 %570
  %v572 = vsel %vm568, %v561, 0.0
  %573 = vadd.xlane.f32.xlu0 %v572
  %v574 = vpop.xlane.xlu0 %573
  %v575 = vsel %vm568, %v562, 0.0
  %576 = vadd.xlane.f32.xlu0 %v575
  %v577 = vpop.xlane.xlu0 %576
  %v578 = vsel %vm568, %v563, 0.0
  %579 = vadd.xlane.f32.xlu0 %v578
  %v580 = vpop.xlane.xlu0 %579
  %v581 = vsel %vm568, %v564, 0.0
  %582 = vadd.xlane.f32.xlu0 %v581
  %v583 = vpop.xlane.xlu0 %582
  %v584 = vsel %vm568, %v565, 0.0
  %585 = vadd.xlane.f32.xlu0 %v584
  %v586 = vpop.xlane.xlu0 %585
  %v587 = vsel %vm568, %v566, 0.0
  %588 = vadd.xlane.f32.xlu0 %v587
  %v589 = vpop.xlane.xlu0 %588
  %v590 = vsel %vm568, %v567, 0.0
  %591 = vadd.xlane.f32.xlu0 %v590
  %v592 = vpop.xlane.xlu0 %591
  %v593 = vld [vmem:[#allocation2] sm:$0x1]
  %v595 = vlaneseq
  %v596 = vshrl.u32 %v595, 7
  %v597 = vsub.s32 0, %v596
  %v598 = vrot.slane %v593, %v597
  %v600 = vadd.f32 %v571, %v598
  %v601 = vadd.f32 %v574, %v598
  %v602 = vadd.f32 %v577, %v598
  %v603 = vadd.f32 %v580, %v598
  %v604 = vadd.f32 %v583, %v598
  %v605 = vadd.f32 %v586, %v598
  %v606 = vadd.f32 %v589, %v598
  %v607 = vadd.f32 %v592, %v598
  %v608 = vmax.f32 %v600, 0.0
  %v609 = vmax.f32 %v601, 0.0
  %v610 = vmax.f32 %v602, 0.0
  %v611 = vmax.f32 %v603, 0.0
  %v612 = vmax.f32 %v604, 0.0
  %v613 = vmax.f32 %v605, 0.0
  %v614 = vmax.f32 %v606, 0.0
  %v615 = vmax.f32 %v607, 0.0
  %vm616 = vcmp.lt.f32.partialorder %v608, 1.0
  %vm617 = vcmp.lt.f32.partialorder %v609, 1.0
  %vm618 = vcmp.lt.f32.partialorder %v610, 1.0
  %vm619 = vcmp.lt.f32.partialorder %v611, 1.0
  %vm620 = vcmp.lt.f32.partialorder %v612, 1.0
  %vm621 = vcmp.lt.f32.partialorder %v613, 1.0
  %vm622 = vcmp.lt.f32.partialorder %v614, 1.0
  %vm623 = vcmp.lt.f32.partialorder %v615, 1.0
  %v624 = vsel %vm616, 0.0, 1.0
  %v625 = vsel %vm617, 0.0, 1.0
  %v626 = vsel %vm618, 0.0, 1.0
  %v627 = vsel %vm619, 0.0, 1.0
  %v628 = vsel %vm620, 0.0, 1.0
  %v629 = vsel %vm621, 0.0, 1.0
  %v630 = vsel %vm622, 0.0, 1.0
  %v631 = vsel %vm623, 0.0, 1.0
  %vm632 = vcmask 7168
  %633 = vst.msk [vmem:[%s28] sm:$0xff] %vm632, %v624
  %634 = vst.msk [vmem:[%s28 + $0x8] sm:$0xff] %vm632, %v625
  %635 = vst.msk [vmem:[%s28 + $0x10] sm:$0xff] %vm632, %v626
  %636 = vst.msk [vmem:[%s28 + $0x18] sm:$0xff] %vm632, %v627
  %637 = vst.msk [vmem:[%s28 + $0x20] sm:$0xff] %vm632, %v628
  %638 = vst.msk [vmem:[%s28 + $0x28] sm:$0xff] %vm632, %v629
  %639 = vst.msk [vmem:[%s28 + $0x30] sm:$0xff] %vm632, %v630
  %640 = vst.msk [vmem:[%s28 + $0x38] sm:$0xff] %vm632, %v631
  %v641 = vld [vmem:[%s12] sm:$0xff]
  %v642 = vld [vmem:[%s12 + $0x8] sm:$0xff]
  %v643 = vld [vmem:[%s12 + $0x10] sm:$0xff]
  %v644 = vld [vmem:[%s12 + $0x18] sm:$0xff]
  %v645 = vld [vmem:[%s13] sm:$0x1]
  %v647 = vlaneseq
  %v648 = vshrl.u32 %v647, 7
  %v649 = vsub.s32 0, %v648
  %v650 = vrot.slane %v645, %v649
  %v653 = vsel %vm123, %v93, 0
  %v656 = vsel %vm123, %v94, 0
  %v659 = vsel %vm123, %v95, 0
  %v662 = vsel %vm123, %v96, 0
  %v665 = vsel %vm123, %v97, 0
  %v668 = vsel %vm123, %v98, 0
  %v671 = vsel %vm123, %v99, 0
  %v674 = vsel %vm123, %v100, 0
  %676 = vmatprep.subr.mxu0 0.0
  %677 = vmatpush1.msra.mxu0 %v641
  %678 = vmatprep.subr.mxu0 0.0
  %679 = vmatpush1.msra.mxu0 %v642
  %680 = vmatprep.subr.mxu0 0.0
  %681 = vmatpush1.msra.mxu0 %v643
  %682 = vmatprep.subr.mxu0 0.0
  %683 = vmatpush1.msra.mxu0 %v644
  %684 = vmatprep.subr.mxu0 0.0
  %685 = vmatpush1.msra.mxu0 0.0
  %686 = vmatprep.subr.mxu0 0.0
  %687 = vmatpush1.msra.mxu0 0.0
  %688 = vmatprep.subr.mxu0 0.0
  %689 = vmatpush1.msra.mxu0 0.0
  %690 = vmatprep.subr.mxu0 0.0
  %691 = vmatpush1.msra.mxu0 0.0
  %692 = vmatprep.subr.mxu0 0.0
  %693 = vmatpush1.msra.mxu0 0.0
  %694 = vmatprep.subr.mxu0 0.0
  %695 = vmatpush1.msra.mxu0 0.0
  %696 = vmatprep.subr.mxu0 0.0
  %697 = vmatpush1.msra.mxu0 0.0
  %698 = vmatprep.subr.mxu0 0.0
  %699 = vmatpush1.msra.mxu0 0.0
  %700 = vmatprep.subr.mxu0 0.0
  %701 = vmatpush1.msra.mxu0 0.0
  %702 = vmatprep.subr.mxu0 0.0
  %703 = vmatpush1.msra.mxu0 0.0
  %704 = vmatprep.subr.mxu0 0.0
  %705 = vmatpush1.msra.mxu0 0.0
  %706 = vmatprep.subr.mxu0 0.0
  %707 = vmatpush1.msra.mxu0 0.0
  %708 = vmatprep.subr.mxu0 0.0
  %709 = vmatpush1.msra.mxu0 0.0
  %710 = vmatprep.subr.mxu0 0.0
  %711 = vmatpush1.msra.mxu0 0.0
  %712 = vmatprep.subr.mxu0 0.0
  %713 = vmatpush1.msra.mxu0 0.0
  %714 = vmatprep.subr.mxu0 0.0
  %715 = vmatpush1.msra.mxu0 0.0
  %716 = vmatprep.subr.mxu0 0.0
  %717 = vmatpush1.msra.mxu0 0.0
  %718 = vmatprep.subr.mxu0 0.0
  %719 = vmatpush1.msra.mxu0 0.0
  %720 = vmatprep.subr.mxu0 0.0
  %721 = vmatpush1.msra.mxu0 0.0
  %722 = vmatprep.subr.mxu0 0.0
  %723 = vmatpush1.msra.mxu0 0.0
  %724 = vmatprep.subr.mxu0 0.0
  %725 = vmatpush1.msra.mxu0 0.0
  %726 = vmatprep.subr.mxu0 0.0
  %727 = vmatpush1.msra.mxu0 0.0
  %728 = vmatprep.subr.mxu0 0.0
  %729 = vmatpush1.msra.mxu0 0.0
  %730 = vmatprep.subr.mxu0 0.0
  %731 = vmatpush1.msra.mxu0 0.0
  %732 = vmatprep.subr.mxu0 0.0
  %733 = vmatpush1.msra.mxu0 0.0
  %734 = vmatprep.subr.mxu0 0.0
  %735 = vmatpush1.msra.mxu0 0.0
  %736 = vmatprep.subr.mxu0 0.0
  %737 = vmatpush1.msra.mxu0 0.0
  %738 = vmatprep.subr.mxu0 0.0
  %739 = vmatpush1.msra.mxu0 0.0
  %740 = vmatprep.mubr.f32.mxu0 0.0
  %741 = vmatmul.mubr.f32.gmra.mrb[0].mxu0 %v653
  %v742 = vpop.f32.mrb[0].mxu0
  %v743 = vadd.f32 %v650, %v742
  %v744 = vpop.f32.mrb[0].mxu0
  %745 = vmatprep.mubr.f32.mxu0 0.0
  %746 = vmatmul.mubr.f32.gmra.mrb[0].mxu0 %v656
  %v747 = vpop.f32.mrb[0].mxu0
  %v748 = vadd.f32 %v650, %v747
  %v749 = vpop.f32.mrb[0].mxu0
  %750 = vmatprep.mubr.f32.mxu0 0.0
  %751 = vmatmul.mubr.f32.gmra.mrb[0].mxu0 %v659
  %v752 = vpop.f32.mrb[0].mxu0
  %v753 = vadd.f32 %v650, %v752
  %v754 = vpop.f32.mrb[0].mxu0
  %755 = vmatprep.mubr.f32.mxu0 0.0
  %756 = vmatmul.mubr.f32.gmra.mrb[0].mxu0 %v662
  %v757 = vpop.f32.mrb[0].mxu0
  %v758 = vadd.f32 %v650, %v757
  %v759 = vpop.f32.mrb[0].mxu0
  %760 = vmatprep.mubr.f32.mxu0 0.0
  %761 = vmatmul.mubr.f32.gmra.mrb[0].mxu0 %v665
  %v762 = vpop.f32.mrb[0].mxu0
  %v763 = vadd.f32 %v650, %v762
  %v764 = vpop.f32.mrb[0].mxu0
  %765 = vmatprep.mubr.f32.mxu0 0.0
  %766 = vmatmul.mubr.f32.gmra.mrb[0].mxu0 %v668
  %v767 = vpop.f32.mrb[0].mxu0
  %v768 = vadd.f32 %v650, %v767
  %v769 = vpop.f32.mrb[0].mxu0
  %770 = vmatprep.mubr.f32.mxu0 0.0
  %771 = vmatmul.mubr.f32.gmra.mrb[0].mxu0 %v671
  %v772 = vpop.f32.mrb[0].mxu0
  %v773 = vadd.f32 %v650, %v772
  %v774 = vpop.f32.mrb[0].mxu0
  %775 = vmatprep.mubr.f32.mxu0 0.0
  %776 = vmatmul.mubr.f32.gmra.mrb[0].mxu0 %v674
  %v777 = vpop.f32.mrb[0].mxu0
  %v778 = vadd.f32 %v650, %v777
  %v779 = vpop.f32.mrb[0].mxu0
  %780 = vdwg.mxu0
  %v781 = vsel %vm123, %v743, -inf
  %782 = vmax.xlane.f32.xlu0 %v781
  %v783 = vpop.xlane.xlu0 %782
  %v784 = vsel %vm123, %v748, -inf
  %785 = vmax.xlane.f32.xlu0 %v784
  %v786 = vpop.xlane.xlu0 %785
  %v787 = vsel %vm123, %v753, -inf
  %788 = vmax.xlane.f32.xlu0 %v787
  %v789 = vpop.xlane.xlu0 %788
  %v790 = vsel %vm123, %v758, -inf
  %791 = vmax.xlane.f32.xlu0 %v790
  %v792 = vpop.xlane.xlu0 %791
  %v793 = vsel %vm123, %v763, -inf
  %794 = vmax.xlane.f32.xlu0 %v793
  %v795 = vpop.xlane.xlu0 %794
  %v796 = vsel %vm123, %v768, -inf
  %797 = vmax.xlane.f32.xlu0 %v796
  %v798 = vpop.xlane.xlu0 %797
  %v799 = vsel %vm123, %v773, -inf
  %800 = vmax.xlane.f32.xlu0 %v799
  %v801 = vpop.xlane.xlu0 %800
  %v802 = vsel %vm123, %v778, -inf
  %803 = vmax.xlane.f32.xlu0 %v802
  %v804 = vpop.xlane.xlu0 %803
  %v805 = vsub.f32 %v743, %v783
  %v806 = vsub.f32 %v748, %v786
  %v807 = vsub.f32 %v753, %v789
  %v808 = vsub.f32 %v758, %v792
  %v809 = vsub.f32 %v763, %v795
  %v810 = vsub.f32 %v768, %v798
  %v811 = vsub.f32 %v773, %v801
  %v812 = vsub.f32 %v778, %v804
  %v813 = vmul.f32 %v805, 1.442695
  %v814 = vpow.pop %v813
  %v815 = vmul.f32 %v806, 1.442695
  %v816 = vpow.pop %v815
  %v817 = vmul.f32 %v807, 1.442695
  %v818 = vpow.pop %v817
  %v819 = vmul.f32 %v808, 1.442695
  %v820 = vpow.pop %v819
  %v821 = vmul.f32 %v809, 1.442695
  %v822 = vpow.pop %v821
  %v823 = vmul.f32 %v810, 1.442695
  %v824 = vpow.pop %v823
  %v825 = vmul.f32 %v811, 1.442695
  %v826 = vpow.pop %v825
  %v827 = vmul.f32 %v812, 1.442695
  %v828 = vpow.pop %v827
  %v829 = vsel %vm123, %v814, 0.0
  %830 = vadd.xlane.f32.xlu0 %v829
  %v831 = vpop.xlane.xlu0 %830
  %v832 = vsel %vm123, %v816, 0.0
  %833 = vadd.xlane.f32.xlu0 %v832
  %v834 = vpop.xlane.xlu0 %833
  %v835 = vsel %vm123, %v818, 0.0
  %836 = vadd.xlane.f32.xlu0 %v835
  %v837 = vpop.xlane.xlu0 %836
  %v838 = vsel %vm123, %v820, 0.0
  %839 = vadd.xlane.f32.xlu0 %v838
  %v840 = vpop.xlane.xlu0 %839
  %v841 = vsel %vm123, %v822, 0.0
  %842 = vadd.xlane.f32.xlu0 %v841
  %v843 = vpop.xlane.xlu0 %842
  %v844 = vsel %vm123, %v824, 0.0
  %845 = vadd.xlane.f32.xlu0 %v844
  %v846 = vpop.xlane.xlu0 %845
  %v847 = vsel %vm123, %v826, 0.0
  %848 = vadd.xlane.f32.xlu0 %v847
  %v849 = vpop.xlane.xlu0 %848
  %v850 = vsel %vm123, %v828, 0.0
  %851 = vadd.xlane.f32.xlu0 %v850
  %v852 = vpop.xlane.xlu0 %851
  %v853 = vrcp.pop %v831
  %v854 = vrcp.pop %v834
  %v855 = vrcp.pop %v837
  %v856 = vrcp.pop %v840
  %v857 = vrcp.pop %v843
  %v858 = vrcp.pop %v846
  %v859 = vrcp.pop %v849
  %v860 = vrcp.pop %v852
  %v861 = vmul.f32 %v814, %v853
  %v862 = vmul.f32 %v816, %v854
  %v863 = vmul.f32 %v818, %v855
  %v864 = vmul.f32 %v820, %v856
  %v865 = vmul.f32 %v822, %v857
  %v866 = vmul.f32 %v824, %v858
  %v867 = vmul.f32 %v826, %v859
  %v868 = vmul.f32 %v828, %v860
  %v869 = vld [vmem:[%s3] sm:$0xff]
  %871 = vset.pattern.permute.xlu0 0
  %872 = vperm.xlu0 %871, %v624
  %v873 = vpop.permute.xlu0 %872
  %876 = vset.pattern.permute.xlu0 0
  %877 = vperm.xlu0 %876, %v625
  %v878 = vpop.permute.xlu0 %877
  %881 = vset.pattern.permute.xlu0 0
  %882 = vperm.xlu0 %881, %v626
  %v883 = vpop.permute.xlu0 %882
  %886 = vset.pattern.permute.xlu0 0
  %887 = vperm.xlu0 %886, %v627
  %v888 = vpop.permute.xlu0 %887
  %891 = vset.pattern.permute.xlu0 0
  %892 = vperm.xlu0 %891, %v628
  %v893 = vpop.permute.xlu0 %892
  %896 = vset.pattern.permute.xlu0 0
  %897 = vperm.xlu0 %896, %v629
  %v898 = vpop.permute.xlu0 %897
  %901 = vset.pattern.permute.xlu0 0
  %902 = vperm.xlu0 %901, %v630
  %v903 = vpop.permute.xlu0 %902
  %906 = vset.pattern.permute.xlu0 0
  %907 = vperm.xlu0 %906, %v631
  %v908 = vpop.permute.xlu0 %907
  %v910 = vmul.f32 %v873, %v861
  %v911 = vmul.f32 %v878, %v862
  %v912 = vmul.f32 %v883, %v863
  %v913 = vmul.f32 %v888, %v864
  %v914 = vmul.f32 %v893, %v865
  %v915 = vmul.f32 %v898, %v866
  %v916 = vmul.f32 %v903, %v867
  %v917 = vmul.f32 %v908, %v868
  %v918 = vmul.f32 %v910, %v93
  %v919 = vmul.f32 %v911, %v94
  %v920 = vmul.f32 %v912, %v95
  %v921 = vmul.f32 %v913, %v96
  %v922 = vmul.f32 %v914, %v97
  %v923 = vmul.f32 %v915, %v98
  %v924 = vmul.f32 %v916, %v99
  %v925 = vmul.f32 %v917, %v100
  %vm926 = vcmask 523264
  %v928 = vsel %vm926, %v869, 0
  %930 = vmatprep.subr.mxu0 0.0
  %931 = vmatpush1.msra.mxu0 %v918
  %932 = vmatprep.subr.mxu0 0.0
  %933 = vmatpush1.msra.mxu0 %v919
  %934 = vmatprep.subr.mxu0 0.0
  %935 = vmatpush1.msra.mxu0 %v920
  %936 = vmatprep.subr.mxu0 0.0
  %937 = vmatpush1.msra.mxu0 %v921
  %938 = vmatprep.subr.mxu0 0.0
  %939 = vmatpush1.msra.mxu0 %v922
  %940 = vmatprep.subr.mxu0 0.0
  %941 = vmatpush1.msra.mxu0 %v923
  %942 = vmatprep.subr.mxu0 0.0
  %943 = vmatpush1.msra.mxu0 %v924
  %944 = vmatprep.subr.mxu0 0.0
  %945 = vmatpush1.msra.mxu0 %v925
  %946 = vmatprep.subr.mxu0 0.0
  %947 = vmatpush1.msra.mxu0 0.0
  %948 = vmatprep.subr.mxu0 0.0
  %949 = vmatpush1.msra.mxu0 0.0
  %950 = vmatprep.subr.mxu0 0.0
  %951 = vmatpush1.msra.mxu0 0.0
  %952 = vmatprep.subr.mxu0 0.0
  %953 = vmatpush1.msra.mxu0 0.0
  %954 = vmatprep.subr.mxu0 0.0
  %955 = vmatpush1.msra.mxu0 0.0
  %956 = vmatprep.subr.mxu0 0.0
  %957 = vmatpush1.msra.mxu0 0.0
  %958 = vmatprep.subr.mxu0 0.0
  %959 = vmatpush1.msra.mxu0 0.0
  %960 = vmatprep.subr.mxu0 0.0
  %961 = vmatpush1.msra.mxu0 0.0
  %962 = vmatprep.subr.mxu0 0.0
  %963 = vmatpush1.msra.mxu0 0.0
  %964 = vmatprep.subr.mxu0 0.0
  %965 = vmatpush1.msra.mxu0 0.0
  %966 = vmatprep.subr.mxu0 0.0
  %967 = vmatpush1.msra.mxu0 0.0
  %968 = vmatprep.subr.mxu0 0.0
  %969 = vmatpush1.msra.mxu0 0.0
  %970 = vmatprep.subr.mxu0 0.0
  %971 = vmatpush1.msra.mxu0 0.0
  %972 = vmatprep.subr.mxu0 0.0
  %973 = vmatpush1.msra.mxu0 0.0
  %974 = vmatprep.subr.mxu0 0.0
  %975 = vmatpush1.msra.mxu0 0.0
  %976 = vmatprep.subr.mxu0 0.0
  %977 = vmatpush1.msra.mxu0 0.0
  %978 = vmatprep.subr.mxu0 0.0
  %979 = vmatpush1.msra.mxu0 0.0
  %980 = vmatprep.subr.mxu0 0.0
  %981 = vmatpush1.msra.mxu0 0.0
  %982 = vmatprep.subr.mxu0 0.0
  %983 = vmatpush1.msra.mxu0 0.0
  %984 = vmatprep.subr.mxu0 0.0
  %985 = vmatpush1.msra.mxu0 0.0
  %986 = vmatprep.subr.mxu0 0.0
  %987 = vmatpush1.msra.mxu0 0.0
  %988 = vmatprep.subr.mxu0 0.0
  %989 = vmatpush1.msra.mxu0 0.0
  %990 = vmatprep.subr.mxu0 0.0
  %991 = vmatpush1.msra.mxu0 0.0
  %992 = vmatprep.subr.mxu0 0.0
  %993 = vmatpush1.msra.mxu0 0.0
  %994 = vmatprep.mubr.f32.mxu0 0.0
  %995 = vmatmul.mubr.f32.gmra.mrb[0].mxu0 %v928
  %v996 = vpop.f32.mrb[0].mxu0
  %v997 = vadd.f32 0.0, %v996
  %v998 = vpop.f32.mrb[0].mxu0
  %999 = vdwg.mxu0
  %1001 = vset.pattern.permute.xlu0 0
  %1002 = vperm.xlu0 %1001, %v608
  %v1003 = vpop.permute.xlu0 %1002
  %1006 = vset.pattern.permute.xlu0 0
  %1007 = vperm.xlu0 %1006, %v609
  %v1008 = vpop.permute.xlu0 %1007
  %1011 = vset.pattern.permute.xlu0 0
  %1012 = vperm.xlu0 %1011, %v610
  %v1013 = vpop.permute.xlu0 %1012
  %1016 = vset.pattern.permute.xlu0 0
  %1017 = vperm.xlu0 %1016, %v611
  %v1018 = vpop.permute.xlu0 %1017
  %1021 = vset.pattern.permute.xlu0 0
  %1022 = vperm.xlu0 %1021, %v612
  %v1023 = vpop.permute.xlu0 %1022
  %1026 = vset.pattern.permute.xlu0 0
  %1027 = vperm.xlu0 %1026, %v613
  %v1028 = vpop.permute.xlu0 %1027
  %1031 = vset.pattern.permute.xlu0 0
  %1032 = vperm.xlu0 %1031, %v614
  %v1033 = vpop.permute.xlu0 %1032
  %1036 = vset.pattern.permute.xlu0 0
  %1037 = vperm.xlu0 %1036, %v615
  %v1038 = vpop.permute.xlu0 %1037
  %v1040 = vmul.f32 %v1003, %v110
  %v1041 = vmul.f32 %v1008, %v111
  %v1042 = vmul.f32 %v1013, %v112
  %v1043 = vmul.f32 %v1018, %v113
  %v1044 = vmul.f32 %v1023, %v114
  %v1045 = vmul.f32 %v1028, %v115
  %v1046 = vmul.f32 %v1033, %v116
  %v1047 = vmul.f32 %v1038, %v117
  %v1049 = vsel %vm926, %v118, 0
  %1051 = vmatprep.subr.mxu0 0.0
  %1052 = vmatpush1.msra.mxu0 %v1040
  %1053 = vmatprep.subr.mxu0 0.0
  %1054 = vmatpush1.msra.mxu0 %v1041
  %1055 = vmatprep.subr.mxu0 0.0
  %1056 = vmatpush1.msra.mxu0 %v1042
  %1057 = vmatprep.subr.mxu0 0.0
  %1058 = vmatpush1.msra.mxu0 %v1043
  %1059 = vmatprep.subr.mxu0 0.0
  %1060 = vmatpush1.msra.mxu0 %v1044
  %1061 = vmatprep.subr.mxu0 0.0
  %1062 = vmatpush1.msra.mxu0 %v1045
  %1063 = vmatprep.subr.mxu0 0.0
  %1064 = vmatpush1.msra.mxu0 %v1046
  %1065 = vmatprep.subr.mxu0 0.0
  %1066 = vmatpush1.msra.mxu0 %v1047
  %1067 = vmatprep.subr.mxu0 0.0
  %1068 = vmatpush1.msra.mxu0 0.0
  %1069 = vmatprep.subr.mxu0 0.0
  %1070 = vmatpush1.msra.mxu0 0.0
  %1071 = vmatprep.subr.mxu0 0.0
  %1072 = vmatpush1.msra.mxu0 0.0
  %1073 = vmatprep.subr.mxu0 0.0
  %1074 = vmatpush1.msra.mxu0 0.0
  %1075 = vmatprep.subr.mxu0 0.0
  %1076 = vmatpush1.msra.mxu0 0.0
  %1077 = vmatprep.subr.mxu0 0.0
  %1078 = vmatpush1.msra.mxu0 0.0
  %1079 = vmatprep.subr.mxu0 0.0
  %1080 = vmatpush1.msra.mxu0 0.0
  %1081 = vmatprep.subr.mxu0 0.0
  %1082 = vmatpush1.msra.mxu0 0.0
  %1083 = vmatprep.subr.mxu0 0.0
  %1084 = vmatpush1.msra.mxu0 0.0
  %1085 = vmatprep.subr.mxu0 0.0
  %1086 = vmatpush1.msra.mxu0 0.0
  %1087 = vmatprep.subr.mxu0 0.0
  %1088 = vmatpush1.msra.mxu0 0.0
  %1089 = vmatprep.subr.mxu0 0.0
  %1090 = vmatpush1.msra.mxu0 0.0
  %1091 = vmatprep.subr.mxu0 0.0
  %1092 = vmatpush1.msra.mxu0 0.0
  %1093 = vmatprep.subr.mxu0 0.0
  %1094 = vmatpush1.msra.mxu0 0.0
  %1095 = vmatprep.subr.mxu0 0.0
  %1096 = vmatpush1.msra.mxu0 0.0
  %1097 = vmatprep.subr.mxu0 0.0
  %1098 = vmatpush1.msra.mxu0 0.0
  %1099 = vmatprep.subr.mxu0 0.0
  %1100 = vmatpush1.msra.mxu0 0.0
  %1101 = vmatprep.subr.mxu0 0.0
  %1102 = vmatpush1.msra.mxu0 0.0
  %1103 = vmatprep.subr.mxu0 0.0
  %1104 = vmatpush1.msra.mxu0 0.0
  %1105 = vmatprep.subr.mxu0 0.0
  %1106 = vmatpush1.msra.mxu0 0.0
  %1107 = vmatprep.subr.mxu0 0.0
  %1108 = vmatpush1.msra.mxu0 0.0
  %1109 = vmatprep.subr.mxu0 0.0
  %1110 = vmatpush1.msra.mxu0 0.0
  %1111 = vmatprep.subr.mxu0 0.0
  %1112 = vmatpush1.msra.mxu0 0.0
  %1113 = vmatprep.subr.mxu0 0.0
  %1114 = vmatpush1.msra.mxu0 0.0
  %1115 = vmatprep.mubr.f32.mxu0 0.0
  %1116 = vmatmul.mubr.f32.gmra.mrb[0].mxu0 %v1049
  %v1117 = vpop.f32.mrb[0].mxu0
  %v1118 = vadd.f32 0.0, %v1117
  %v1119 = vpop.f32.mrb[0].mxu0
  %1120 = vdwg.mxu0
  %v1121 = vsel %vm271, %v1118, 0.0
  %1122 = vadd.xlane.f32.xlu0 %v1121
  %v1123 = vpop.xlane.xlu0 %1122
  %v1124 = vmax.f32 %v1123, 0.0001
  %v1125 = vrsqrt.pop %v1124
  %v1126 = vmul.f32 %v1125, %v92
  %v1128 = vsel %vm271, %v1118, 0
  %1130 = vmatprep.subr.mxu0 0.0
  %1131 = vmatpush1.msra.mxu0 %v1126
  %1132 = vmatprep.subr.mxu0 0.0
  %1133 = vmatpush1.msra.mxu0 0.0
  %1134 = vmatprep.subr.mxu0 0.0
  %1135 = vmatpush1.msra.mxu0 0.0
  %1136 = vmatprep.subr.mxu0 0.0
  %1137 = vmatpush1.msra.mxu0 0.0
  %1138 = vmatprep.subr.mxu0 0.0
  %1139 = vmatpush1.msra.mxu0 0.0
  %1140 = vmatprep.subr.mxu0 0.0
  %1141 = vmatpush1.msra.mxu0 0.0
  %1142 = vmatprep.subr.mxu0 0.0
  %1143 = vmatpush1.msra.mxu0 0.0
  %1144 = vmatprep.subr.mxu0 0.0
  %1145 = vmatpush1.msra.mxu0 0.0
  %1146 = vmatprep.subr.mxu0 0.0
  %1147 = vmatpush1.msra.mxu0 0.0
  %1148 = vmatprep.subr.mxu0 0.0
  %1149 = vmatpush1.msra.mxu0 0.0
  %1150 = vmatprep.subr.mxu0 0.0
  %1151 = vmatpush1.msra.mxu0 0.0
  %1152 = vmatprep.subr.mxu0 0.0
  %1153 = vmatpush1.msra.mxu0 0.0
  %1154 = vmatprep.subr.mxu0 0.0
  %1155 = vmatpush1.msra.mxu0 0.0
  %1156 = vmatprep.subr.mxu0 0.0
  %1157 = vmatpush1.msra.mxu0 0.0
  %1158 = vmatprep.subr.mxu0 0.0
  %1159 = vmatpush1.msra.mxu0 0.0
  %1160 = vmatprep.subr.mxu0 0.0
  %1161 = vmatpush1.msra.mxu0 0.0
  %1162 = vmatprep.subr.mxu0 0.0
  %1163 = vmatpush1.msra.mxu0 0.0
  %1164 = vmatprep.subr.mxu0 0.0
  %1165 = vmatpush1.msra.mxu0 0.0
  %1166 = vmatprep.subr.mxu0 0.0
  %1167 = vmatpush1.msra.mxu0 0.0
  %1168 = vmatprep.subr.mxu0 0.0
  %1169 = vmatpush1.msra.mxu0 0.0
  %1170 = vmatprep.subr.mxu0 0.0
  %1171 = vmatpush1.msra.mxu0 0.0
  %1172 = vmatprep.subr.mxu0 0.0
  %1173 = vmatpush1.msra.mxu0 0.0
  %1174 = vmatprep.subr.mxu0 0.0
  %1175 = vmatpush1.msra.mxu0 0.0
  %1176 = vmatprep.subr.mxu0 0.0
  %1177 = vmatpush1.msra.mxu0 0.0
  %1178 = vmatprep.subr.mxu0 0.0
  %1179 = vmatpush1.msra.mxu0 0.0
  %1180 = vmatprep.subr.mxu0 0.0
  %1181 = vmatpush1.msra.mxu0 0.0
  %1182 = vmatprep.subr.mxu0 0.0
  %1183 = vmatpush1.msra.mxu0 0.0
  %1184 = vmatprep.subr.mxu0 0.0
  %1185 = vmatpush1.msra.mxu0 0.0
  %1186 = vmatprep.subr.mxu0 0.0
  %1187 = vmatpush1.msra.mxu0 0.0
  %1188 = vmatprep.subr.mxu0 0.0
  %1189 = vmatpush1.msra.mxu0 0.0
  %1190 = vmatprep.subr.mxu0 0.0
  %1191 = vmatpush1.msra.mxu0 0.0
  %1192 = vmatprep.subr.mxu0 0.0
  %1193 = vmatpush1.msra.mxu0 0.0
  %1194 = vmatprep.mubr.f32.mxu0 0.0
  %1195 = vmatmul.mubr.f32.gmra.mrb[0].mxu0 %v1128
  %v1196 = vpop.f32.mrb[0].mxu0
  %v1197 = vadd.f32 0.0, %v1196
  %v1198 = vpop.f32.mrb[0].mxu0
  %1199 = vdwg.mxu0
  %v1200 = vmul.f32 %v1125, %v1197
  %v1201 = vld [vmem:[%s19] sm:$0xff]
  %v1202 = vld [vmem:[%s19 + $0x8] sm:$0xff]
  %v1203 = vld [vmem:[%s19 + $0x10] sm:$0xff]
  %v1204 = vld [vmem:[%s19 + $0x18] sm:$0xff]
  %v1206 = vsel %vm123, %v1200, 0
  %1208 = vmatprep.subr.mxu0 0.0
  %1209 = vmatpush1.msra.mxu0 %v1201
  %1210 = vmatprep.subr.mxu0 0.0
  %1211 = vmatpush1.msra.mxu0 %v1202
  %1212 = vmatprep.subr.mxu0 0.0
  %1213 = vmatpush1.msra.mxu0 %v1203
  %1214 = vmatprep.subr.mxu0 0.0
  %1215 = vmatpush1.msra.mxu0 %v1204
  %1216 = vmatprep.subr.mxu0 0.0
  %1217 = vmatpush1.msra.mxu0 0.0
  %1218 = vmatprep.subr.mxu0 0.0
  %1219 = vmatpush1.msra.mxu0 0.0
  %1220 = vmatprep.subr.mxu0 0.0
  %1221 = vmatpush1.msra.mxu0 0.0
  %1222 = vmatprep.subr.mxu0 0.0
  %1223 = vmatpush1.msra.mxu0 0.0
  %1224 = vmatprep.subr.mxu0 0.0
  %1225 = vmatpush1.msra.mxu0 0.0
  %1226 = vmatprep.subr.mxu0 0.0
  %1227 = vmatpush1.msra.mxu0 0.0
  %1228 = vmatprep.subr.mxu0 0.0
  %1229 = vmatpush1.msra.mxu0 0.0
  %1230 = vmatprep.subr.mxu0 0.0
  %1231 = vmatpush1.msra.mxu0 0.0
  %1232 = vmatprep.subr.mxu0 0.0
  %1233 = vmatpush1.msra.mxu0 0.0
  %1234 = vmatprep.subr.mxu0 0.0
  %1235 = vmatpush1.msra.mxu0 0.0
  %1236 = vmatprep.subr.mxu0 0.0
  %1237 = vmatpush1.msra.mxu0 0.0
  %1238 = vmatprep.subr.mxu0 0.0
  %1239 = vmatpush1.msra.mxu0 0.0
  %1240 = vmatprep.subr.mxu0 0.0
  %1241 = vmatpush1.msra.mxu0 0.0
  %1242 = vmatprep.subr.mxu0 0.0
  %1243 = vmatpush1.msra.mxu0 0.0
  %1244 = vmatprep.subr.mxu0 0.0
  %1245 = vmatpush1.msra.mxu0 0.0
  %1246 = vmatprep.subr.mxu0 0.0
  %1247 = vmatpush1.msra.mxu0 0.0
  %1248 = vmatprep.subr.mxu0 0.0
  %1249 = vmatpush1.msra.mxu0 0.0
  %1250 = vmatprep.subr.mxu0 0.0
  %1251 = vmatpush1.msra.mxu0 0.0
  %1252 = vmatprep.subr.mxu0 0.0
  %1253 = vmatpush1.msra.mxu0 0.0
  %1254 = vmatprep.subr.mxu0 0.0
  %1255 = vmatpush1.msra.mxu0 0.0
  %1256 = vmatprep.subr.mxu0 0.0
  %1257 = vmatpush1.msra.mxu0 0.0
  %1258 = vmatprep.subr.mxu0 0.0
  %1259 = vmatpush1.msra.mxu0 0.0
  %1260 = vmatprep.subr.mxu0 0.0
  %1261 = vmatpush1.msra.mxu0 0.0
  %1262 = vmatprep.subr.mxu0 0.0
  %1263 = vmatpush1.msra.mxu0 0.0
  %1264 = vmatprep.subr.mxu0 0.0
  %1265 = vmatpush1.msra.mxu0 0.0
  %1266 = vmatprep.subr.mxu0 0.0
  %1267 = vmatpush1.msra.mxu0 0.0
  %1268 = vmatprep.subr.mxu0 0.0
  %1269 = vmatpush1.msra.mxu0 0.0
  %1270 = vmatprep.subr.mxu0 0.0
  %1271 = vmatpush1.msra.mxu0 0.0
  %1272 = vmatprep.mubr.f32.mxu0 0.0
  %1273 = vmatmul.mubr.f32.gmra.mrb[0].mxu0 %v1206
  %v1274 = vpop.f32.mrb[0].mxu0
  %v1275 = vadd.f32 0.0, %v1274
  %v1276 = vpop.f32.mrb[0].mxu0
  %1277 = vdwg.mxu0
  %v1278 = vld [vmem:[%s21] sm:$0xff]
  %v1279 = vld [vmem:[%s21 + $0x8] sm:$0xff]
  %v1280 = vld [vmem:[%s21 + $0x10] sm:$0xff]
  %v1281 = vld [vmem:[%s21 + $0x18] sm:$0xff]
  %v1282 = vld [vmem:[%s22] sm:$0x1]
  %v1284 = vlaneseq
  %v1285 = vshrl.u32 %v1284, 7
  %v1286 = vsub.s32 0, %v1285
  %v1287 = vrot.slane %v1282, %v1286
  %v1290 = vsel %vm123, %v1275, 0
  %1292 = vmatprep.subr.mxu0 0.0
  %1293 = vmatpush1.msra.mxu0 %v1278
  %1294 = vmatprep.subr.mxu0 0.0
  %1295 = vmatpush1.msra.mxu0 %v1279
  %1296 = vmatprep.subr.mxu0 0.0
  %1297 = vmatpush1.msra.mxu0 %v1280
  %1298 = vmatprep.subr.mxu0 0.0
  %1299 = vmatpush1.msra.mxu0 %v1281
  %1300 = vmatprep.subr.mxu0 0.0
  %1301 = vmatpush1.msra.mxu0 0.0
  %1302 = vmatprep.subr.mxu0 0.0
  %1303 = vmatpush1.msra.mxu0 0.0
  %1304 = vmatprep.subr.mxu0 0.0
  %1305 = vmatpush1.msra.mxu0 0.0
  %1306 = vmatprep.subr.mxu0 0.0
  %1307 = vmatpush1.msra.mxu0 0.0
  %1308 = vmatprep.subr.mxu0 0.0
  %1309 = vmatpush1.msra.mxu0 0.0
  %1310 = vmatprep.subr.mxu0 0.0
  %1311 = vmatpush1.msra.mxu0 0.0
  %1312 = vmatprep.subr.mxu0 0.0
  %1313 = vmatpush1.msra.mxu0 0.0
  %1314 = vmatprep.subr.mxu0 0.0
  %1315 = vmatpush1.msra.mxu0 0.0
  %1316 = vmatprep.subr.mxu0 0.0
  %1317 = vmatpush1.msra.mxu0 0.0
  %1318 = vmatprep.subr.mxu0 0.0
  %1319 = vmatpush1.msra.mxu0 0.0
  %1320 = vmatprep.subr.mxu0 0.0
  %1321 = vmatpush1.msra.mxu0 0.0
  %1322 = vmatprep.subr.mxu0 0.0
  %1323 = vmatpush1.msra.mxu0 0.0
  %1324 = vmatprep.subr.mxu0 0.0
  %1325 = vmatpush1.msra.mxu0 0.0
  %1326 = vmatprep.subr.mxu0 0.0
  %1327 = vmatpush1.msra.mxu0 0.0
  %1328 = vmatprep.subr.mxu0 0.0
  %1329 = vmatpush1.msra.mxu0 0.0
  %1330 = vmatprep.subr.mxu0 0.0
  %1331 = vmatpush1.msra.mxu0 0.0
  %1332 = vmatprep.subr.mxu0 0.0
  %1333 = vmatpush1.msra.mxu0 0.0
  %1334 = vmatprep.subr.mxu0 0.0
  %1335 = vmatpush1.msra.mxu0 0.0
  %1336 = vmatprep.subr.mxu0 0.0
  %1337 = vmatpush1.msra.mxu0 0.0
  %1338 = vmatprep.subr.mxu0 0.0
  %1339 = vmatpush1.msra.mxu0 0.0
  %1340 = vmatprep.subr.mxu0 0.0
  %1341 = vmatpush1.msra.mxu0 0.0
  %1342 = vmatprep.subr.mxu0 0.0
  %1343 = vmatpush1.msra.mxu0 0.0
  %1344 = vmatprep.subr.mxu0 0.0
  %1345 = vmatpush1.msra.mxu0 0.0
  %1346 = vmatprep.subr.mxu0 0.0
  %1347 = vmatpush1.msra.mxu0 0.0
  %1348 = vmatprep.subr.mxu0 0.0
  %1349 = vmatpush1.msra.mxu0 0.0
  %1350 = vmatprep.subr.mxu0 0.0
  %1351 = vmatpush1.msra.mxu0 0.0
  %1352 = vmatprep.subr.mxu0 0.0
  %1353 = vmatpush1.msra.mxu0 0.0
  %1354 = vmatprep.subr.mxu0 0.0
  %1355 = vmatpush1.msra.mxu0 0.0
  %1356 = vmatprep.mubr.f32.mxu0 0.0
  %1357 = vmatmul.mubr.f32.gmra.mrb[0].mxu0 %v1290
  %v1358 = vpop.f32.mrb[0].mxu0
  %v1359 = vadd.f32 %v1287, %v1358
  %v1360 = vpop.f32.mrb[0].mxu0
  %1361 = vdwg.mxu0
  %v1362 = vand.u32 2147483647, %v1359
  %v1363 = vsel %vm123, %v1362, -inf
  %1364 = vmax.xlane.f32.xlu0 %v1363
  %v1365 = vpop.xlane.xlu0 %1364
  %v1366 = vrot.slane %v1365, 4
  %v1367 = vmax.f32 %v1365, %v1366
  %v1368 = vrot.slane %v1367, 2
  %v1369 = vmax.f32 %v1367, %v1368
  %v1370 = vrot.slane %v1369, 1
  %v1371 = vmax.f32 %v1369, %v1370
  %s1372 = vtos %v1371
  %s1373 = smax.f32 %s1372, 0.0001
  %v1374 = vstv %s1373
  %v1375 = vrcp.pop %v1374
  %v1376 = vmul.f32 %v1359, %v1375
  %v1377 = vld [vmem:[%s23] sm:$0xff]
  %v1378 = vld [vmem:[%s23 + $0x8] sm:$0xff]
  %v1379 = vld [vmem:[%s23 + $0x10] sm:$0xff]
  %v1380 = vld [vmem:[%s23 + $0x18] sm:$0xff]
  %v1381 = vld [vmem:[%s24] sm:$0x1]
  %v1383 = vlaneseq
  %v1384 = vshrl.u32 %v1383, 7
  %v1385 = vsub.s32 0, %v1384
  %v1386 = vrot.slane %v1381, %v1385
  %v1389 = vsel %vm123, %v101, 0
  %1391 = vmatprep.subr.mxu0 0.0
  %1392 = vmatpush1.msra.mxu0 %v1377
  %1393 = vmatprep.subr.mxu0 0.0
  %1394 = vmatpush1.msra.mxu0 %v1378
  %1395 = vmatprep.subr.mxu0 0.0
  %1396 = vmatpush1.msra.mxu0 %v1379
  %1397 = vmatprep.subr.mxu0 0.0
  %1398 = vmatpush1.msra.mxu0 %v1380
  %1399 = vmatprep.subr.mxu0 0.0
  %1400 = vmatpush1.msra.mxu0 0.0
  %1401 = vmatprep.subr.mxu0 0.0
  %1402 = vmatpush1.msra.mxu0 0.0
  %1403 = vmatprep.subr.mxu0 0.0
  %1404 = vmatpush1.msra.mxu0 0.0
  %1405 = vmatprep.subr.mxu0 0.0
  %1406 = vmatpush1.msra.mxu0 0.0
  %1407 = vmatprep.subr.mxu0 0.0
  %1408 = vmatpush1.msra.mxu0 0.0
  %1409 = vmatprep.subr.mxu0 0.0
  %1410 = vmatpush1.msra.mxu0 0.0
  %1411 = vmatprep.subr.mxu0 0.0
  %1412 = vmatpush1.msra.mxu0 0.0
  %1413 = vmatprep.subr.mxu0 0.0
  %1414 = vmatpush1.msra.mxu0 0.0
  %1415 = vmatprep.subr.mxu0 0.0
  %1416 = vmatpush1.msra.mxu0 0.0
  %1417 = vmatprep.subr.mxu0 0.0
  %1418 = vmatpush1.msra.mxu0 0.0
  %1419 = vmatprep.subr.mxu0 0.0
  %1420 = vmatpush1.msra.mxu0 0.0
  %1421 = vmatprep.subr.mxu0 0.0
  %1422 = vmatpush1.msra.mxu0 0.0
  %1423 = vmatprep.subr.mxu0 0.0
  %1424 = vmatpush1.msra.mxu0 0.0
  %1425 = vmatprep.subr.mxu0 0.0
  %1426 = vmatpush1.msra.mxu0 0.0
  %1427 = vmatprep.subr.mxu0 0.0
  %1428 = vmatpush1.msra.mxu0 0.0
  %1429 = vmatprep.subr.mxu0 0.0
  %1430 = vmatpush1.msra.mxu0 0.0
  %1431 = vmatprep.subr.mxu0 0.0
  %1432 = vmatpush1.msra.mxu0 0.0
  %1433 = vmatprep.subr.mxu0 0.0
  %1434 = vmatpush1.msra.mxu0 0.0
  %1435 = vmatprep.subr.mxu0 0.0
  %1436 = vmatpush1.msra.mxu0 0.0
  %1437 = vmatprep.subr.mxu0 0.0
  %1438 = vmatpush1.msra.mxu0 0.0
  %1439 = vmatprep.subr.mxu0 0.0
  %1440 = vmatpush1.msra.mxu0 0.0
  %1441 = vmatprep.subr.mxu0 0.0
  %1442 = vmatpush1.msra.mxu0 0.0
  %1443 = vmatprep.subr.mxu0 0.0
  %1444 = vmatpush1.msra.mxu0 0.0
  %1445 = vmatprep.subr.mxu0 0.0
  %1446 = vmatpush1.msra.mxu0 0.0
  %1447 = vmatprep.subr.mxu0 0.0
  %1448 = vmatpush1.msra.mxu0 0.0
  %1449 = vmatprep.subr.mxu0 0.0
  %1450 = vmatpush1.msra.mxu0 0.0
  %1451 = vmatprep.subr.mxu0 0.0
  %1452 = vmatpush1.msra.mxu0 0.0
  %1453 = vmatprep.subr.mxu0 0.0
  %1454 = vmatpush1.msra.mxu0 0.0
  %1455 = vmatprep.mubr.f32.mxu0 0.0
  %1456 = vmatmul.mubr.f32.gmra.mrb[0].mxu0 %v1389
  %v1457 = vpop.f32.mrb[0].mxu0
  %v1458 = vadd.f32 %v1386, %v1457
  %v1459 = vpop.f32.mrb[0].mxu0
  %1460 = vdwg.mxu0
  %v1461 = vmax.f32 %v1458, 0.0
  %v1462 = vld [vmem:[%s25] sm:$0x1]
  %v1464 = vlaneseq
  %v1465 = vshrl.u32 %v1464, 7
  %v1466 = vsub.s32 0, %v1465
  %v1467 = vrot.slane %v1462, %v1466
  %v1469 = vmul.f32 %v1461, %v1467
  %v1470 = vsel %vm568, %v1469, 0.0
  %1471 = vadd.xlane.f32.xlu0 %v1470
  %v1472 = vpop.xlane.xlu0 %1471
  %v1473 = vld [vmem:[#allocation3] sm:$0x1]
  %v1475 = vlaneseq
  %v1476 = vshrl.u32 %v1475, 7
  %v1477 = vsub.s32 0, %v1476
  %v1478 = vrot.slane %v1473, %v1477
  %v1480 = vadd.f32 %v1472, %v1478
  %vm1481 = vcmp.eq.f32.partialorder %v1480, 0.0
  %v1482 = vsel %vm1481, 0.0001, %v1480
  %1483 = vmatprep.subr.mxu0 0.0
  %1484 = vmatpush1.msra.mxu0 %v1377
  %1485 = vmatprep.subr.mxu0 0.0
  %1486 = vmatpush1.msra.mxu0 %v1378
  %1487 = vmatprep.subr.mxu0 0.0
  %1488 = vmatpush1.msra.mxu0 %v1379
  %1489 = vmatprep.subr.mxu0 0.0
  %1490 = vmatpush1.msra.mxu0 %v1380
  %1491 = vmatprep.subr.mxu0 0.0
  %1492 = vmatpush1.msra.mxu0 0.0
  %1493 = vmatprep.subr.mxu0 0.0
  %1494 = vmatpush1.msra.mxu0 0.0
  %1495 = vmatprep.subr.mxu0 0.0
  %1496 = vmatpush1.msra.mxu0 0.0
  %1497 = vmatprep.subr.mxu0 0.0
  %1498 = vmatpush1.msra.mxu0 0.0
  %1499 = vmatprep.subr.mxu0 0.0
  %1500 = vmatpush1.msra.mxu0 0.0
  %1501 = vmatprep.subr.mxu0 0.0
  %1502 = vmatpush1.msra.mxu0 0.0
  %1503 = vmatprep.subr.mxu0 0.0
  %1504 = vmatpush1.msra.mxu0 0.0
  %1505 = vmatprep.subr.mxu0 0.0
  %1506 = vmatpush1.msra.mxu0 0.0
  %1507 = vmatprep.subr.mxu0 0.0
  %1508 = vmatpush1.msra.mxu0 0.0
  %1509 = vmatprep.subr.mxu0 0.0
  %1510 = vmatpush1.msra.mxu0 0.0
  %1511 = vmatprep.subr.mxu0 0.0
  %1512 = vmatpush1.msra.mxu0 0.0
  %1513 = vmatprep.subr.mxu0 0.0
  %1514 = vmatpush1.msra.mxu0 0.0
  %1515 = vmatprep.subr.mxu0 0.0
  %1516 = vmatpush1.msra.mxu0 0.0
  %1517 = vmatprep.subr.mxu0 0.0
  %1518 = vmatpush1.msra.mxu0 0.0
  %1519 = vmatprep.subr.mxu0 0.0
  %1520 = vmatpush1.msra.mxu0 0.0
  %1521 = vmatprep.subr.mxu0 0.0
  %1522 = vmatpush1.msra.mxu0 0.0
  %1523 = vmatprep.subr.mxu0 0.0
  %1524 = vmatpush1.msra.mxu0 0.0
  %1525 = vmatprep.subr.mxu0 0.0
  %1526 = vmatpush1.msra.mxu0 0.0
  %1527 = vmatprep.subr.mxu0 0.0
  %1528 = vmatpush1.msra.mxu0 0.0
  %1529 = vmatprep.subr.mxu0 0.0
  %1530 = vmatpush1.msra.mxu0 0.0
  %1531 = vmatprep.subr.mxu0 0.0
  %1532 = vmatpush1.msra.mxu0 0.0
  %1533 = vmatprep.subr.mxu0 0.0
  %1534 = vmatpush1.msra.mxu0 0.0
  %1535 = vmatprep.subr.mxu0 0.0
  %1536 = vmatpush1.msra.mxu0 0.0
  %1537 = vmatprep.subr.mxu0 0.0
  %1538 = vmatpush1.msra.mxu0 0.0
  %1539 = vmatprep.subr.mxu0 0.0
  %1540 = vmatpush1.msra.mxu0 0.0
  %1541 = vmatprep.subr.mxu0 0.0
  %1542 = vmatpush1.msra.mxu0 0.0
  %1543 = vmatprep.subr.mxu0 0.0
  %1544 = vmatpush1.msra.mxu0 0.0
  %1545 = vmatprep.subr.mxu0 0.0
  %1546 = vmatpush1.msra.mxu0 0.0
  %1547 = vmatprep.mubr.f32.mxu0 0.0
  %1548 = vmatmul.mubr.f32.gmra.mrb[0].mxu0 %v125
  %v1549 = vpop.f32.mrb[0].mxu0
  %v1550 = vadd.f32 %v1386, %v1549
  %v1551 = vpop.f32.mrb[0].mxu0
  %1552 = vdwg.mxu0
  %v1553 = vmax.f32 %v1550, 0.0
  %v1554 = vmul.f32 %v1553, %v1467
  %v1555 = vsel %vm568, %v1554, 0.0
  %1556 = vadd.xlane.f32.xlu0 %v1555
  %v1557 = vpop.xlane.xlu0 %1556
  %v1558 = vadd.f32 %v1557, %v1478
  %v1559 = vrcp.pop %v1482
  %v1560 = vmul.f32 %v1558, %v1559
  %v1561 = vsub.f32 %v101, %v92
  %v1562 = vmax.f32 %v1561, 0.0
  %v1563 = vld [vmem:[%s20] sm:$0xff]
  %v1564 = vld [vmem:[%s20 + $0x8] sm:$0xff]
  %v1565 = vld [vmem:[%s20 + $0x10] sm:$0xff]
  %v1566 = vld [vmem:[%s20 + $0x18] sm:$0xff]
  %v1568 = vsel %vm123, %v1562, 0
  %1570 = vmatprep.subr.mxu0 0.0
  %1571 = vmatpush1.msra.mxu0 %v1563
  %1572 = vmatprep.subr.mxu0 0.0
  %1573 = vmatpush1.msra.mxu0 %v1564
  %1574 = vmatprep.subr.mxu0 0.0
  %1575 = vmatpush1.msra.mxu0 %v1565
  %1576 = vmatprep.subr.mxu0 0.0
  %1577 = vmatpush1.msra.mxu0 %v1566
  %1578 = vmatprep.subr.mxu0 0.0
  %1579 = vmatpush1.msra.mxu0 0.0
  %1580 = vmatprep.subr.mxu0 0.0
  %1581 = vmatpush1.msra.mxu0 0.0
  %1582 = vmatprep.subr.mxu0 0.0
  %1583 = vmatpush1.msra.mxu0 0.0
  %1584 = vmatprep.subr.mxu0 0.0
  %1585 = vmatpush1.msra.mxu0 0.0
  %1586 = vmatprep.subr.mxu0 0.0
  %1587 = vmatpush1.msra.mxu0 0.0
  %1588 = vmatprep.subr.mxu0 0.0
  %1589 = vmatpush1.msra.mxu0 0.0
  %1590 = vmatprep.subr.mxu0 0.0
  %1591 = vmatpush1.msra.mxu0 0.0
  %1592 = vmatprep.subr.mxu0 0.0
  %1593 = vmatpush1.msra.mxu0 0.0
  %1594 = vmatprep.subr.mxu0 0.0
  %1595 = vmatpush1.msra.mxu0 0.0
  %1596 = vmatprep.subr.mxu0 0.0
  %1597 = vmatpush1.msra.mxu0 0.0
  %1598 = vmatprep.subr.mxu0 0.0
  %1599 = vmatpush1.msra.mxu0 0.0
  %1600 = vmatprep.subr.mxu0 0.0
  %1601 = vmatpush1.msra.mxu0 0.0
  %1602 = vmatprep.subr.mxu0 0.0
  %1603 = vmatpush1.msra.mxu0 0.0
  %1604 = vmatprep.subr.mxu0 0.0
  %1605 = vmatpush1.msra.mxu0 0.0
  %1606 = vmatprep.subr.mxu0 0.0
  %1607 = vmatpush1.msra.mxu0 0.0
  %1608 = vmatprep.subr.mxu0 0.0
  %1609 = vmatpush1.msra.mxu0 0.0
  %1610 = vmatprep.subr.mxu0 0.0
  %1611 = vmatpush1.msra.mxu0 0.0
  %1612 = vmatprep.subr.mxu0 0.0
  %1613 = vmatpush1.msra.mxu0 0.0
  %1614 = vmatprep.subr.mxu0 0.0
  %1615 = vmatpush1.msra.mxu0 0.0
  %1616 = vmatprep.subr.mxu0 0.0
  %1617 = vmatpush1.msra.mxu0 0.0
  %1618 = vmatprep.subr.mxu0 0.0
  %1619 = vmatpush1.msra.mxu0 0.0
  %1620 = vmatprep.subr.mxu0 0.0
  %1621 = vmatpush1.msra.mxu0 0.0
  %1622 = vmatprep.subr.mxu0 0.0
  %1623 = vmatpush1.msra.mxu0 0.0
  %1624 = vmatprep.subr.mxu0 0.0
  %1625 = vmatpush1.msra.mxu0 0.0
  %1626 = vmatprep.subr.mxu0 0.0
  %1627 = vmatpush1.msra.mxu0 0.0
  %1628 = vmatprep.subr.mxu0 0.0
  %1629 = vmatpush1.msra.mxu0 0.0
  %1630 = vmatprep.subr.mxu0 0.0
  %1631 = vmatpush1.msra.mxu0 0.0
  %1632 = vmatprep.subr.mxu0 0.0
  %1633 = vmatpush1.msra.mxu0 0.0
  %1634 = vmatprep.mubr.f32.mxu0 0.0
  %1635 = vmatmul.mubr.f32.gmra.mrb[0].mxu0 %v1568
  %v1636 = vpop.f32.mrb[0].mxu0
  %v1637 = vadd.f32 0.0, %v1636
  %v1638 = vpop.f32.mrb[0].mxu0
  %1639 = vdwg.mxu0
  %1641 = vset.pattern.permute.xlu0 0
  %1642 = vperm.xlu0 %1641, %v1560
  %v1643 = vpop.permute.xlu0 %1642
  %v1645 = vmul.f32 %v1643, %v1637
  %v1646 = vmul.f32 %v1376, %v1645
  %v1647 = vadd.f32 %v1646, %v997
  %v1648 = vld [vmem:[%s14] sm:$0xff]
  %v1649 = vld [vmem:[%s14 + $0x8] sm:$0xff]
  %v1650 = vld [vmem:[%s14 + $0x10] sm:$0xff]
  %v1651 = vld [vmem:[%s14 + $0x18] sm:$0xff]
  %v1652 = vld [vmem:[%s15] sm:$0x1]
  %v1654 = vlaneseq
  %v1655 = vshrl.u32 %v1654, 7
  %v1656 = vsub.s32 0, %v1655
  %v1657 = vrot.slane %v1652, %v1656
  %1659 = vmatprep.subr.mxu0 0.0
  %1660 = vmatpush1.msra.mxu0 %v1648
  %1661 = vmatprep.subr.mxu0 0.0
  %1662 = vmatpush1.msra.mxu0 %v1649
  %1663 = vmatprep.subr.mxu0 0.0
  %1664 = vmatpush1.msra.mxu0 %v1650
  %1665 = vmatprep.subr.mxu0 0.0
  %1666 = vmatpush1.msra.mxu0 %v1651
  %1667 = vmatprep.subr.mxu0 0.0
  %1668 = vmatpush1.msra.mxu0 0.0
  %1669 = vmatprep.subr.mxu0 0.0
  %1670 = vmatpush1.msra.mxu0 0.0
  %1671 = vmatprep.subr.mxu0 0.0
  %1672 = vmatpush1.msra.mxu0 0.0
  %1673 = vmatprep.subr.mxu0 0.0
  %1674 = vmatpush1.msra.mxu0 0.0
  %1675 = vmatprep.subr.mxu0 0.0
  %1676 = vmatpush1.msra.mxu0 0.0
  %1677 = vmatprep.subr.mxu0 0.0
  %1678 = vmatpush1.msra.mxu0 0.0
  %1679 = vmatprep.subr.mxu0 0.0
  %1680 = vmatpush1.msra.mxu0 0.0
  %1681 = vmatprep.subr.mxu0 0.0
  %1682 = vmatpush1.msra.mxu0 0.0
  %1683 = vmatprep.subr.mxu0 0.0
  %1684 = vmatpush1.msra.mxu0 0.0
  %1685 = vmatprep.subr.mxu0 0.0
  %1686 = vmatpush1.msra.mxu0 0.0
  %1687 = vmatprep.subr.mxu0 0.0
  %1688 = vmatpush1.msra.mxu0 0.0
  %1689 = vmatprep.subr.mxu0 0.0
  %1690 = vmatpush1.msra.mxu0 0.0
  %1691 = vmatprep.subr.mxu0 0.0
  %1692 = vmatpush1.msra.mxu0 0.0
  %1693 = vmatprep.subr.mxu0 0.0
  %1694 = vmatpush1.msra.mxu0 0.0
  %1695 = vmatprep.subr.mxu0 0.0
  %1696 = vmatpush1.msra.mxu0 0.0
  %1697 = vmatprep.subr.mxu0 0.0
  %1698 = vmatpush1.msra.mxu0 0.0
  %1699 = vmatprep.subr.mxu0 0.0
  %1700 = vmatpush1.msra.mxu0 0.0
  %1701 = vmatprep.subr.mxu0 0.0
  %1702 = vmatpush1.msra.mxu0 0.0
  %1703 = vmatprep.subr.mxu0 0.0
  %1704 = vmatpush1.msra.mxu0 0.0
  %1705 = vmatprep.subr.mxu0 0.0
  %1706 = vmatpush1.msra.mxu0 0.0
  %1707 = vmatprep.subr.mxu0 0.0
  %1708 = vmatpush1.msra.mxu0 0.0
  %1709 = vmatprep.subr.mxu0 0.0
  %1710 = vmatpush1.msra.mxu0 0.0
  %1711 = vmatprep.subr.mxu0 0.0
  %1712 = vmatpush1.msra.mxu0 0.0
  %1713 = vmatprep.subr.mxu0 0.0
  %1714 = vmatpush1.msra.mxu0 0.0
  %1715 = vmatprep.subr.mxu0 0.0
  %1716 = vmatpush1.msra.mxu0 0.0
  %1717 = vmatprep.subr.mxu0 0.0
  %1718 = vmatpush1.msra.mxu0 0.0
  %1719 = vmatprep.subr.mxu0 0.0
  %1720 = vmatpush1.msra.mxu0 0.0
  %1721 = vmatprep.subr.mxu0 0.0
  %1722 = vmatpush1.msra.mxu0 0.0
  %1723 = vmatprep.mubr.f32.mxu0 0.0
  %1724 = vmatmul.mubr.f32.gmra.mrb[0].mxu0 %v653
  %v1725 = vpop.f32.mrb[0].mxu0
  %v1726 = vadd.f32 %v1657, %v1725
  %v1727 = vpop.f32.mrb[0].mxu0
  %1728 = vmatprep.mubr.f32.mxu0 0.0
  %1729 = vmatmul.mubr.f32.gmra.mrb[0].mxu0 %v656
  %v1730 = vpop.f32.mrb[0].mxu0
  %v1731 = vadd.f32 %v1657, %v1730
  %v1732 = vpop.f32.mrb[0].mxu0
  %1733 = vmatprep.mubr.f32.mxu0 0.0
  %1734 = vmatmul.mubr.f32.gmra.mrb[0].mxu0 %v659
  %v1735 = vpop.f32.mrb[0].mxu0
  %v1736 = vadd.f32 %v1657, %v1735
  %v1737 = vpop.f32.mrb[0].mxu0
  %1738 = vmatprep.mubr.f32.mxu0 0.0
  %1739 = vmatmul.mubr.f32.gmra.mrb[0].mxu0 %v662
  %v1740 = vpop.f32.mrb[0].mxu0
  %v1741 = vadd.f32 %v1657, %v1740
  %v1742 = vpop.f32.mrb[0].mxu0
  %1743 = vmatprep.mubr.f32.mxu0 0.0
  %1744 = vmatmul.mubr.f32.gmra.mrb[0].mxu0 %v665
  %v1745 = vpop.f32.mrb[0].mxu0
  %v1746 = vadd.f32 %v1657, %v1745
  %v1747 = vpop.f32.mrb[0].mxu0
  %1748 = vmatprep.mubr.f32.mxu0 0.0
  %1749 = vmatmul.mubr.f32.gmra.mrb[0].mxu0 %v668
  %v1750 = vpop.f32.mrb[0].mxu0
  %v1751 = vadd.f32 %v1657, %v1750
  %v1752 = vpop.f32.mrb[0].mxu0
  %1753 = vmatprep.mubr.f32.mxu0 0.0
  %1754 = vmatmul.mubr.f32.gmra.mrb[0].mxu0 %v671
  %v1755 = vpop.f32.mrb[0].mxu0
  %v1756 = vadd.f32 %v1657, %v1755
  %v1757 = vpop.f32.mrb[0].mxu0
  %1758 = vmatprep.mubr.f32.mxu0 0.0
  %1759 = vmatmul.mubr.f32.gmra.mrb[0].mxu0 %v674
  %v1760 = vpop.f32.mrb[0].mxu0
  %v1761 = vadd.f32 %v1657, %v1760
  %v1762 = vpop.f32.mrb[0].mxu0
  %1763 = vdwg.mxu0
  %v1764 = vld [vmem:[%s16] sm:$0xff]
  %v1765 = vld [vmem:[%s16 + $0x8] sm:$0xff]
  %v1766 = vld [vmem:[%s16 + $0x10] sm:$0xff]
  %v1767 = vld [vmem:[%s16 + $0x18] sm:$0xff]
  %1768 = vmatprep.subr.mxu0 0.0
  %1769 = vmatpush1.msra.mxu0 %v1764
  %1770 = vmatprep.subr.mxu0 0.0
  %1771 = vmatpush1.msra.mxu0 %v1765
  %1772 = vmatprep.subr.mxu0 0.0
  %1773 = vmatpush1.msra.mxu0 %v1766
  %1774 = vmatprep.subr.mxu0 0.0
  %1775 = vmatpush1.msra.mxu0 %v1767
  %1776 = vmatprep.subr.mxu0 0.0
  %1777 = vmatpush1.msra.mxu0 0.0
  %1778 = vmatprep.subr.mxu0 0.0
  %1779 = vmatpush1.msra.mxu0 0.0
  %1780 = vmatprep.subr.mxu0 0.0
  %1781 = vmatpush1.msra.mxu0 0.0
  %1782 = vmatprep.subr.mxu0 0.0
  %1783 = vmatpush1.msra.mxu0 0.0
  %1784 = vmatprep.subr.mxu0 0.0
  %1785 = vmatpush1.msra.mxu0 0.0
  %1786 = vmatprep.subr.mxu0 0.0
  %1787 = vmatpush1.msra.mxu0 0.0
  %1788 = vmatprep.subr.mxu0 0.0
  %1789 = vmatpush1.msra.mxu0 0.0
  %1790 = vmatprep.subr.mxu0 0.0
  %1791 = vmatpush1.msra.mxu0 0.0
  %1792 = vmatprep.subr.mxu0 0.0
  %1793 = vmatpush1.msra.mxu0 0.0
  %1794 = vmatprep.subr.mxu0 0.0
  %1795 = vmatpush1.msra.mxu0 0.0
  %1796 = vmatprep.subr.mxu0 0.0
  %1797 = vmatpush1.msra.mxu0 0.0
  %1798 = vmatprep.subr.mxu0 0.0
  %1799 = vmatpush1.msra.mxu0 0.0
  %1800 = vmatprep.subr.mxu0 0.0
  %1801 = vmatpush1.msra.mxu0 0.0
  %1802 = vmatprep.subr.mxu0 0.0
  %1803 = vmatpush1.msra.mxu0 0.0
  %1804 = vmatprep.subr.mxu0 0.0
  %1805 = vmatpush1.msra.mxu0 0.0
  %1806 = vmatprep.subr.mxu0 0.0
  %1807 = vmatpush1.msra.mxu0 0.0
  %1808 = vmatprep.subr.mxu0 0.0
  %1809 = vmatpush1.msra.mxu0 0.0
  %1810 = vmatprep.subr.mxu0 0.0
  %1811 = vmatpush1.msra.mxu0 0.0
  %1812 = vmatprep.subr.mxu0 0.0
  %1813 = vmatpush1.msra.mxu0 0.0
  %1814 = vmatprep.subr.mxu0 0.0
  %1815 = vmatpush1.msra.mxu0 0.0
  %1816 = vmatprep.subr.mxu0 0.0
  %1817 = vmatpush1.msra.mxu0 0.0
  %1818 = vmatprep.subr.mxu0 0.0
  %1819 = vmatpush1.msra.mxu0 0.0
  %1820 = vmatprep.subr.mxu0 0.0
  %1821 = vmatpush1.msra.mxu0 0.0
  %1822 = vmatprep.subr.mxu0 0.0
  %1823 = vmatpush1.msra.mxu0 0.0
  %1824 = vmatprep.subr.mxu0 0.0
  %1825 = vmatpush1.msra.mxu0 0.0
  %1826 = vmatprep.subr.mxu0 0.0
  %1827 = vmatpush1.msra.mxu0 0.0
  %1828 = vmatprep.subr.mxu0 0.0
  %1829 = vmatpush1.msra.mxu0 0.0
  %1830 = vmatprep.subr.mxu0 0.0
  %1831 = vmatpush1.msra.mxu0 0.0
  %1832 = vmatprep.mubr.f32.mxu0 0.0
  %1833 = vmatmul.mubr.f32.gmra.mrb[0].mxu0 %v125
  %v1834 = vpop.f32.mrb[0].mxu0
  %v1835 = vadd.f32 0.0, %v1834
  %v1836 = vpop.f32.mrb[0].mxu0
  %1837 = vdwg.mxu0
  %v1838 = vld [vmem:[%s17] sm:$0xff]
  %v1839 = vld [vmem:[%s17 + $0x8] sm:$0xff]
  %v1840 = vld [vmem:[%s17 + $0x10] sm:$0xff]
  %v1841 = vld [vmem:[%s17 + $0x18] sm:$0xff]
  %1842 = vmatprep.subr.mxu0 0.0
  %1843 = vmatpush1.msra.mxu0 %v1838
  %1844 = vmatprep.subr.mxu0 0.0
  %1845 = vmatpush1.msra.mxu0 %v1839
  %1846 = vmatprep.subr.mxu0 0.0
  %1847 = vmatpush1.msra.mxu0 %v1840
  %1848 = vmatprep.subr.mxu0 0.0
  %1849 = vmatpush1.msra.mxu0 %v1841
  %1850 = vmatprep.subr.mxu0 0.0
  %1851 = vmatpush1.msra.mxu0 0.0
  %1852 = vmatprep.subr.mxu0 0.0
  %1853 = vmatpush1.msra.mxu0 0.0
  %1854 = vmatprep.subr.mxu0 0.0
  %1855 = vmatpush1.msra.mxu0 0.0
  %1856 = vmatprep.subr.mxu0 0.0
  %1857 = vmatpush1.msra.mxu0 0.0
  %1858 = vmatprep.subr.mxu0 0.0
  %1859 = vmatpush1.msra.mxu0 0.0
  %1860 = vmatprep.subr.mxu0 0.0
  %1861 = vmatpush1.msra.mxu0 0.0
  %1862 = vmatprep.subr.mxu0 0.0
  %1863 = vmatpush1.msra.mxu0 0.0
  %1864 = vmatprep.subr.mxu0 0.0
  %1865 = vmatpush1.msra.mxu0 0.0
  %1866 = vmatprep.subr.mxu0 0.0
  %1867 = vmatpush1.msra.mxu0 0.0
  %1868 = vmatprep.subr.mxu0 0.0
  %1869 = vmatpush1.msra.mxu0 0.0
  %1870 = vmatprep.subr.mxu0 0.0
  %1871 = vmatpush1.msra.mxu0 0.0
  %1872 = vmatprep.subr.mxu0 0.0
  %1873 = vmatpush1.msra.mxu0 0.0
  %1874 = vmatprep.subr.mxu0 0.0
  %1875 = vmatpush1.msra.mxu0 0.0
  %1876 = vmatprep.subr.mxu0 0.0
  %1877 = vmatpush1.msra.mxu0 0.0
  %1878 = vmatprep.subr.mxu0 0.0
  %1879 = vmatpush1.msra.mxu0 0.0
  %1880 = vmatprep.subr.mxu0 0.0
  %1881 = vmatpush1.msra.mxu0 0.0
  %1882 = vmatprep.subr.mxu0 0.0
  %1883 = vmatpush1.msra.mxu0 0.0
  %1884 = vmatprep.subr.mxu0 0.0
  %1885 = vmatpush1.msra.mxu0 0.0
  %1886 = vmatprep.subr.mxu0 0.0
  %1887 = vmatpush1.msra.mxu0 0.0
  %1888 = vmatprep.subr.mxu0 0.0
  %1889 = vmatpush1.msra.mxu0 0.0
  %1890 = vmatprep.subr.mxu0 0.0
  %1891 = vmatpush1.msra.mxu0 0.0
  %1892 = vmatprep.subr.mxu0 0.0
  %1893 = vmatpush1.msra.mxu0 0.0
  %1894 = vmatprep.subr.mxu0 0.0
  %1895 = vmatpush1.msra.mxu0 0.0
  %1896 = vmatprep.subr.mxu0 0.0
  %1897 = vmatpush1.msra.mxu0 0.0
  %1898 = vmatprep.subr.mxu0 0.0
  %1899 = vmatpush1.msra.mxu0 0.0
  %1900 = vmatprep.subr.mxu0 0.0
  %1901 = vmatpush1.msra.mxu0 0.0
  %1902 = vmatprep.subr.mxu0 0.0
  %1903 = vmatpush1.msra.mxu0 0.0
  %1904 = vmatprep.subr.mxu0 0.0
  %1905 = vmatpush1.msra.mxu0 0.0
  %1906 = vmatprep.mubr.f32.mxu0 0.0
  %1907 = vmatmul.mubr.f32.gmra.mrb[0].mxu0 %v125
  %v1908 = vpop.f32.mrb[0].mxu0
  %v1909 = vadd.f32 0.0, %v1908
  %v1910 = vpop.f32.mrb[0].mxu0
  %1911 = vdwg.mxu0
  %1912 = vmatprep.subr.mxu0 0.0
  %1913 = vmatpush1.msra.mxu0 %v1909
  %1914 = vmatprep.subr.mxu0 0.0
  %1915 = vmatpush1.msra.mxu0 0.0
  %1916 = vmatprep.subr.mxu0 0.0
  %1917 = vmatpush1.msra.mxu0 0.0
  %1918 = vmatprep.subr.mxu0 0.0
  %1919 = vmatpush1.msra.mxu0 0.0
  %1920 = vmatprep.subr.mxu0 0.0
  %1921 = vmatpush1.msra.mxu0 0.0
  %1922 = vmatprep.subr.mxu0 0.0
  %1923 = vmatpush1.msra.mxu0 0.0
  %1924 = vmatprep.subr.mxu0 0.0
  %1925 = vmatpush1.msra.mxu0 0.0
  %1926 = vmatprep.subr.mxu0 0.0
  %1927 = vmatpush1.msra.mxu0 0.0
  %1928 = vmatprep.subr.mxu0 0.0
  %1929 = vmatpush1.msra.mxu0 0.0
  %1930 = vmatprep.subr.mxu0 0.0
  %1931 = vmatpush1.msra.mxu0 0.0
  %1932 = vmatprep.subr.mxu0 0.0
  %1933 = vmatpush1.msra.mxu0 0.0
  %1934 = vmatprep.subr.mxu0 0.0
  %1935 = vmatpush1.msra.mxu0 0.0
  %1936 = vmatprep.subr.mxu0 0.0
  %1937 = vmatpush1.msra.mxu0 0.0
  %1938 = vmatprep.subr.mxu0 0.0
  %1939 = vmatpush1.msra.mxu0 0.0
  %1940 = vmatprep.subr.mxu0 0.0
  %1941 = vmatpush1.msra.mxu0 0.0
  %1942 = vmatprep.subr.mxu0 0.0
  %1943 = vmatpush1.msra.mxu0 0.0
  %1944 = vmatprep.subr.mxu0 0.0
  %1945 = vmatpush1.msra.mxu0 0.0
  %1946 = vmatprep.subr.mxu0 0.0
  %1947 = vmatpush1.msra.mxu0 0.0
  %1948 = vmatprep.subr.mxu0 0.0
  %1949 = vmatpush1.msra.mxu0 0.0
  %1950 = vmatprep.subr.mxu0 0.0
  %1951 = vmatpush1.msra.mxu0 0.0
  %1952 = vmatprep.subr.mxu0 0.0
  %1953 = vmatpush1.msra.mxu0 0.0
  %1954 = vmatprep.subr.mxu0 0.0
  %1955 = vmatpush1.msra.mxu0 0.0
  %1956 = vmatprep.subr.mxu0 0.0
  %1957 = vmatpush1.msra.mxu0 0.0
  %1958 = vmatprep.subr.mxu0 0.0
  %1959 = vmatpush1.msra.mxu0 0.0
  %1960 = vmatprep.subr.mxu0 0.0
  %1961 = vmatpush1.msra.mxu0 0.0
  %1962 = vmatprep.subr.mxu0 0.0
  %1963 = vmatpush1.msra.mxu0 0.0
  %1964 = vmatprep.subr.mxu0 0.0
  %1965 = vmatpush1.msra.mxu0 0.0
  %1966 = vmatprep.subr.mxu0 0.0
  %1967 = vmatpush1.msra.mxu0 0.0
  %1968 = vmatprep.subr.mxu0 0.0
  %1969 = vmatpush1.msra.mxu0 0.0
  %1970 = vmatprep.subr.mxu0 0.0
  %1971 = vmatpush1.msra.mxu0 0.0
  %1972 = vmatprep.subr.mxu0 0.0
  %1973 = vmatpush1.msra.mxu0 0.0
  %1974 = vmatprep.subr.mxu0 0.0
  %1975 = vmatpush1.msra.mxu0 0.0
  %1976 = vmatprep.mubr.f32.mxu0 0.0
  %1977 = vmatmul.mubr.f32.gmra.mrb[0].mxu0 %v273
  %v1978 = vpop.f32.mrb[0].mxu0
  %v1979 = vadd.f32 0.0, %v1978
  %v1980 = vpop.f32.mrb[0].mxu0
  %1981 = vmatprep.mubr.f32.mxu0 0.0
  %1982 = vmatmul.mubr.f32.gmra.mrb[0].mxu0 %v276
  %v1983 = vpop.f32.mrb[0].mxu0
  %v1984 = vadd.f32 0.0, %v1983
  %v1985 = vpop.f32.mrb[0].mxu0
  %1986 = vmatprep.mubr.f32.mxu0 0.0
  %1987 = vmatmul.mubr.f32.gmra.mrb[0].mxu0 %v279
  %v1988 = vpop.f32.mrb[0].mxu0
  %v1989 = vadd.f32 0.0, %v1988
  %v1990 = vpop.f32.mrb[0].mxu0
  %1991 = vmatprep.mubr.f32.mxu0 0.0
  %1992 = vmatmul.mubr.f32.gmra.mrb[0].mxu0 %v282
  %v1993 = vpop.f32.mrb[0].mxu0
  %v1994 = vadd.f32 0.0, %v1993
  %v1995 = vpop.f32.mrb[0].mxu0
  %1996 = vmatprep.mubr.f32.mxu0 0.0
  %1997 = vmatmul.mubr.f32.gmra.mrb[0].mxu0 %v285
  %v1998 = vpop.f32.mrb[0].mxu0
  %v1999 = vadd.f32 0.0, %v1998
  %v2000 = vpop.f32.mrb[0].mxu0
  %2001 = vmatprep.mubr.f32.mxu0 0.0
  %2002 = vmatmul.mubr.f32.gmra.mrb[0].mxu0 %v288
  %v2003 = vpop.f32.mrb[0].mxu0
  %v2004 = vadd.f32 0.0, %v2003
  %v2005 = vpop.f32.mrb[0].mxu0
  %2006 = vmatprep.mubr.f32.mxu0 0.0
  %2007 = vmatmul.mubr.f32.gmra.mrb[0].mxu0 %v291
  %v2008 = vpop.f32.mrb[0].mxu0
  %v2009 = vadd.f32 0.0, %v2008
  %v2010 = vpop.f32.mrb[0].mxu0
  %2011 = vmatprep.mubr.f32.mxu0 0.0
  %2012 = vmatmul.mubr.f32.gmra.mrb[0].mxu0 %v294
  %v2013 = vpop.f32.mrb[0].mxu0
  %v2014 = vadd.f32 0.0, %v2013
  %v2015 = vpop.f32.mrb[0].mxu0
  %2016 = vdwg.mxu0
  %2017 = vmatprep.subr.mxu0 0.0
  %2018 = vmatpush1.msra.mxu0 %v1835
  %2019 = vmatprep.subr.mxu0 0.0
  %2020 = vmatpush1.msra.mxu0 0.0
  %2021 = vmatprep.subr.mxu0 0.0
  %2022 = vmatpush1.msra.mxu0 0.0
  %2023 = vmatprep.subr.mxu0 0.0
  %2024 = vmatpush1.msra.mxu0 0.0
  %2025 = vmatprep.subr.mxu0 0.0
  %2026 = vmatpush1.msra.mxu0 0.0
  %2027 = vmatprep.subr.mxu0 0.0
  %2028 = vmatpush1.msra.mxu0 0.0
  %2029 = vmatprep.subr.mxu0 0.0
  %2030 = vmatpush1.msra.mxu0 0.0
  %2031 = vmatprep.subr.mxu0 0.0
  %2032 = vmatpush1.msra.mxu0 0.0
  %2033 = vmatprep.subr.mxu0 0.0
  %2034 = vmatpush1.msra.mxu0 0.0
  %2035 = vmatprep.subr.mxu0 0.0
  %2036 = vmatpush1.msra.mxu0 0.0
  %2037 = vmatprep.subr.mxu0 0.0
  %2038 = vmatpush1.msra.mxu0 0.0
  %2039 = vmatprep.subr.mxu0 0.0
  %2040 = vmatpush1.msra.mxu0 0.0
  %2041 = vmatprep.subr.mxu0 0.0
  %2042 = vmatpush1.msra.mxu0 0.0
  %2043 = vmatprep.subr.mxu0 0.0
  %2044 = vmatpush1.msra.mxu0 0.0
  %2045 = vmatprep.subr.mxu0 0.0
  %2046 = vmatpush1.msra.mxu0 0.0
  %2047 = vmatprep.subr.mxu0 0.0
  %2048 = vmatpush1.msra.mxu0 0.0
  %2049 = vmatprep.subr.mxu0 0.0
  %2050 = vmatpush1.msra.mxu0 0.0
  %2051 = vmatprep.subr.mxu0 0.0
  %2052 = vmatpush1.msra.mxu0 0.0
  %2053 = vmatprep.subr.mxu0 0.0
  %2054 = vmatpush1.msra.mxu0 0.0
  %2055 = vmatprep.subr.mxu0 0.0
  %2056 = vmatpush1.msra.mxu0 0.0
  %2057 = vmatprep.subr.mxu0 0.0
  %2058 = vmatpush1.msra.mxu0 0.0
  %2059 = vmatprep.subr.mxu0 0.0
  %2060 = vmatpush1.msra.mxu0 0.0
  %2061 = vmatprep.subr.mxu0 0.0
  %2062 = vmatpush1.msra.mxu0 0.0
  %2063 = vmatprep.subr.mxu0 0.0
  %2064 = vmatpush1.msra.mxu0 0.0
  %2065 = vmatprep.subr.mxu0 0.0
  %2066 = vmatpush1.msra.mxu0 0.0
  %2067 = vmatprep.subr.mxu0 0.0
  %2068 = vmatpush1.msra.mxu0 0.0
  %2069 = vmatprep.subr.mxu0 0.0
  %2070 = vmatpush1.msra.mxu0 0.0
  %2071 = vmatprep.subr.mxu0 0.0
  %2072 = vmatpush1.msra.mxu0 0.0
  %2073 = vmatprep.subr.mxu0 0.0
  %2074 = vmatpush1.msra.mxu0 0.0
  %2075 = vmatprep.subr.mxu0 0.0
  %2076 = vmatpush1.msra.mxu0 0.0
  %2077 = vmatprep.subr.mxu0 0.0
  %2078 = vmatpush1.msra.mxu0 0.0
  %2079 = vmatprep.subr.mxu0 0.0
  %2080 = vmatpush1.msra.mxu0 0.0
  %2081 = vmatprep.mubr.f32.mxu0 0.0
  %2082 = vmatmul.mubr.f32.gmra.mrb[0].mxu0 %v402
  %v2083 = vpop.f32.mrb[0].mxu0
  %v2084 = vadd.f32 %v1979, %v2083
  %v2085 = vpop.f32.mrb[0].mxu0
  %2086 = vmatprep.mubr.f32.mxu0 0.0
  %2087 = vmatmul.mubr.f32.gmra.mrb[0].mxu0 %v405
  %v2088 = vpop.f32.mrb[0].mxu0
  %v2089 = vadd.f32 %v1984, %v2088
  %v2090 = vpop.f32.mrb[0].mxu0
  %2091 = vmatprep.mubr.f32.mxu0 0.0
  %2092 = vmatmul.mubr.f32.gmra.mrb[0].mxu0 %v408
  %v2093 = vpop.f32.mrb[0].mxu0
  %v2094 = vadd.f32 %v1989, %v2093
  %v2095 = vpop.f32.mrb[0].mxu0
  %2096 = vmatprep.mubr.f32.mxu0 0.0
  %2097 = vmatmul.mubr.f32.gmra.mrb[0].mxu0 %v411
  %v2098 = vpop.f32.mrb[0].mxu0
  %v2099 = vadd.f32 %v1994, %v2098
  %v2100 = vpop.f32.mrb[0].mxu0
  %2101 = vmatprep.mubr.f32.mxu0 0.0
  %2102 = vmatmul.mubr.f32.gmra.mrb[0].mxu0 %v414
  %v2103 = vpop.f32.mrb[0].mxu0
  %v2104 = vadd.f32 %v1999, %v2103
  %v2105 = vpop.f32.mrb[0].mxu0
  %2106 = vmatprep.mubr.f32.mxu0 0.0
  %2107 = vmatmul.mubr.f32.gmra.mrb[0].mxu0 %v417
  %v2108 = vpop.f32.mrb[0].mxu0
  %v2109 = vadd.f32 %v2004, %v2108
  %v2110 = vpop.f32.mrb[0].mxu0
  %2111 = vmatprep.mubr.f32.mxu0 0.0
  %2112 = vmatmul.mubr.f32.gmra.mrb[0].mxu0 %v420
  %v2113 = vpop.f32.mrb[0].mxu0
  %v2114 = vadd.f32 %v2009, %v2113
  %v2115 = vpop.f32.mrb[0].mxu0
  %2116 = vmatprep.mubr.f32.mxu0 0.0
  %2117 = vmatmul.mubr.f32.gmra.mrb[0].mxu0 %v423
  %v2118 = vpop.f32.mrb[0].mxu0
  %v2119 = vadd.f32 %v2014, %v2118
  %v2120 = vpop.f32.mrb[0].mxu0
  %2121 = vdwg.mxu0
  %v2122 = vld [vmem:[%s18] sm:$0x1]
  %v2124 = vlaneseq
  %v2125 = vshrl.u32 %v2124, 7
  %v2126 = vsub.s32 0, %v2125
  %v2127 = vrot.slane %v2122, %v2126
  %v2129 = vadd.f32 %v2084, %v2127
  %v2130 = vadd.f32 %v2089, %v2127
  %v2131 = vadd.f32 %v2094, %v2127
  %v2132 = vadd.f32 %v2099, %v2127
  %v2133 = vadd.f32 %v2104, %v2127
  %v2134 = vadd.f32 %v2109, %v2127
  %v2135 = vadd.f32 %v2114, %v2127
  %v2136 = vadd.f32 %v2119, %v2127
  %v2137 = vadd.f32 %v1726, %v2129
  %v2138 = vadd.f32 %v1731, %v2130
  %v2139 = vadd.f32 %v1736, %v2131
  %v2140 = vadd.f32 %v1741, %v2132
  %v2141 = vadd.f32 %v1746, %v2133
  %v2142 = vadd.f32 %v1751, %v2134
  %v2143 = vadd.f32 %v1756, %v2135
  %v2144 = vadd.f32 %v1761, %v2136
  %v2145 = vmul.f32 %v873, %v2137
  %v2146 = vmul.f32 %v878, %v2138
  %v2147 = vmul.f32 %v883, %v2139
  %v2148 = vmul.f32 %v888, %v2140
  %v2149 = vmul.f32 %v893, %v2141
  %v2150 = vmul.f32 %v898, %v2142
  %v2151 = vmul.f32 %v903, %v2143
  %v2152 = vmul.f32 %v908, %v2144
  %2153 = vst.msk [vmem:[%s27] sm:$0xff] %vm123, %v1647
  %2154 = vst.msk [vmem:[%s27 + $0x8] sm:$0xff] %vm123, %v2145
  %2155 = vst.msk [vmem:[%s27 + $0x10] sm:$0xff] %vm123, %v2146
  %2156 = vst.msk [vmem:[%s27 + $0x18] sm:$0xff] %vm123, %v2147
  %2157 = vst.msk [vmem:[%s27 + $0x20] sm:$0xff] %vm123, %v2148
  %2158 = vst.msk [vmem:[%s27 + $0x28] sm:$0xff] %vm123, %v2149
  %2159 = vst.msk [vmem:[%s27 + $0x30] sm:$0xff] %vm123, %v2150
  %2160 = vst.msk [vmem:[%s27 + $0x38] sm:$0xff] %vm123, %v2151
  %2161 = vst.msk [vmem:[%s27 + $0x40] sm:$0xff] %vm123, %v2152
  // Predicated region
  $region110: #{cdgon_ode_forward.1} parent=0 // pred_check
    _
  $region111: #{cdgon_ode_forward.1} parent=0 // pred_check_branch
    %2163 = sbr.rel (0) target = $region113
  $region112: #{cdgon_ode_forward.1} parent=0 // pred_region
    _
  $region113: #{cdgon_ode_forward.1} parent=0 // pred_fallthru
    _
  // Predicated region
  $region114: #{cdgon_ode_forward.1} parent=0 // pred_check
    _
  $region115: #{cdgon_ode_forward.1} parent=0 // pred_check_branch
    %2165 = sbr.rel (0) target = $region117
  $region116: #{cdgon_ode_forward.1} parent=0 // pred_region
    _
  $region117: #{cdgon_ode_forward.1} parent=0 // pred_fallthru
    _
  // Predicated region
  $region118: #{cdgon_ode_forward.1} parent=0 // pred_check
    _
  $region119: #{cdgon_ode_forward.1} parent=0 // pred_check_branch
    %2167 = sbr.rel (0) target = $region121
  $region120: #{cdgon_ode_forward.1} parent=0 // pred_region
    _
  $region121: #{cdgon_ode_forward.1} parent=0 // pred_fallthru
    _
  // Predicated region
  $region122: #{cdgon_ode_forward.1} parent=0 // pred_check
    _
  $region123: #{cdgon_ode_forward.1} parent=0 // pred_check_branch
    %2169 = sbr.rel (0) target = $region125
  $region124: #{cdgon_ode_forward.1} parent=0 // pred_region
    _
  $region125: #{cdgon_ode_forward.1} parent=0 // pred_fallthru
    _

</llo_original>
